<compile_context>
chip_gen: v5e
topology: v5e:2x2
jax: 0.10.0
libtpu: 0.0.40
codegen_flags: <defaults>
</compile_context>

<pallas_src>
import jax
import jax.numpy as jnp
from jax.experimental import pallas as pl
from jax.experimental.pallas import tpu as pltpu

LANE = 128
SUBLANE = 8
EDGE_TILE = 128   # edges per grid step (multiple of 128 for lane-dense dst tile)


def _round_up(v, m):
    return (v + m - 1) // m * m


def _pad2d(a, rows, cols):
    r, c = a.shape
    return jnp.pad(a.astype(jnp.float32), ((0, rows - r), (0, cols - c)))


# ----------------------------------------------------------------------------
# Fused kernel: grid = (n_layers, n_edge_tiles)
#   message:   m_e = ReLU([x_src_e, edge_attr_e] @ Wm + bm)
#   aggregate: aggr_i = sum_{e: dst_e == i} m_e        (accumulated over tiles)
#   update:    out_i = ReLU([aggr_i, x_i] @ Wa + ba)   (at the last edge tile)
# ----------------------------------------------------------------------------
def fused_txgnn_kernel(src_ref, dst_ref, x_ref, e_ref,
                       wmx_ref, wme_ref, bm_ref,
                       waa_ref, wax_ref, ba_ref,
                       out_ref, cur_ref, aggr_ref):
    layer = pl.program_id(0)
    tile = pl.program_id(1)
    n_tiles = pl.num_programs(1)

    te = e_ref.shape[0]
    n_pad = cur_ref.shape[0]

    # Very first grid step: stage the padded input node features into scratch.
    @pl.when(jnp.logical_and(layer == 0, tile == 0))
    def _():
        cur_ref[...] = x_ref[...]

    # Start of each layer's edge reduction: zero the aggregation accumulator.
    @pl.when(tile == 0)
    def _():
        aggr_ref[...] = jnp.zeros_like(aggr_ref)

    src = src_ref[...]                       # [te, 1] int32
    dst = dst_ref[...]                       # [1, te] int32 (padded -> n_pad)

    # Gather x_j = cur[src] for this edge tile (per-tile one-hot matmul).
    gather = (jax.lax.broadcasted_iota(jnp.int32, (te, n_pad), 1) == src
              ).astype(jnp.float32)
    x_j = jnp.dot(gather, cur_ref[...], preferred_element_type=jnp.float32)

    # Message MLP: ReLU([x_j, edge_attr] @ Wm + bm), Wm split by input part.
    m = (jnp.dot(x_j, wmx_ref[...], preferred_element_type=jnp.float32)
         + jnp.dot(e_ref[...], wme_ref[...], preferred_element_type=jnp.float32)
         + bm_ref[...])
    m = jnp.maximum(m, 0.0)

    # Scatter-add by destination (padded dst == n_pad matches no row -> 0).
    scatter = (jax.lax.broadcasted_iota(jnp.int32, (n_pad, te), 0) == dst
               ).astype(jnp.float32)
    aggr_ref[...] += jnp.dot(scatter, m, preferred_element_type=jnp.float32)

    # Last edge tile of this layer: run the update MLP.
    @pl.when(tile == n_tiles - 1)
    def _():
        upd = (jnp.dot(aggr_ref[...], waa_ref[...],
                       preferred_element_type=jnp.float32)
               + jnp.dot(cur_ref[...], wax_ref[...],
                         preferred_element_type=jnp.float32)
               + ba_ref[...])
        upd = jnp.maximum(upd, 0.0)
        # Becomes next layer's input (the inter-layer functional ReLU is
        # idempotent since upd is already ReLU'd).  At the final layer this
        # write is harmless; out_ref is only flushed once at grid end.
        cur_ref[...] = upd
        out_ref[...] = upd


# ----------------------------------------------------------------------------
# Wrapper: pad / stack params, build grid spec, call the fused kernel.
# ----------------------------------------------------------------------------
def txgnn_pallas(x, src, dst, edge_attr, params1, params2, *, edge_tile=EDGE_TILE):
    N, _ = x.shape
    E, _ = edge_attr.shape
    out_dim = params2["bm"].shape[-1]

    fp = LANE                                  # padded node-feature width
    ep = LANE                                  # padded edge-feature width
    n_pad = _round_up(max(N, SUBLANE), SUBLANE)
    te = edge_tile
    e_pad = _round_up(max(E, te), te)
    n_tiles = e_pad // te
    n_layers = 2

    # ---- pad node / edge features ----
    x_pad = _pad2d(x, n_pad, fp)
    e_attr_pad = _pad2d(edge_attr, e_pad, ep)

    # Padded edges: src -> node 0 (harmless), dst -> n_pad (no scatter match).
    src_pad = jnp.concatenate(
        [src.astype(jnp.int32), jnp.zeros((e_pad - E,), jnp.int32)])
    dst_pad = jnp.concatenate(
        [dst.astype(jnp.int32), jnp.full((e_pad - E,), n_pad, jnp.int32)])
    src2d = src_pad.reshape(e_pad, 1)
    dst2d = dst_pad.reshape(1, e_pad)

    # ---- zero-pad + stack per-layer weights to [2, 128, 128] / [2, 1, 128] ----
    def pad_params(p):
        return dict(wmx=_pad2d(p["wmx"], fp, fp), wme=_pad2d(p["wme"], ep, fp),
                    bm=_pad2d(p["bm"], 1, fp),
                    waa=_pad2d(p["waa"], fp, fp), wax=_pad2d(p["wax"], fp, fp),
                    ba=_pad2d(p["ba"], 1, fp))

    p1, p2 = pad_params(params1), pad_params(params2)
    stack = lambda k: jnp.stack([p1[k], p2[k]])
    wmx, wme, bm = stack("wmx"), stack("wme"), stack("bm")
    waa, wax, ba = stack("waa"), stack("wax"), stack("ba")

    edge_map = lambda l, t: (t, 0)
    node_map = lambda l, t: (0, 0)
    layer_map = lambda l, t: (l, 0, 0)

    grid_spec = pltpu.PrefetchScalarGridSpec(
        num_scalar_prefetch=0,
        grid=(n_layers, n_tiles),
        in_specs=[
            pl.BlockSpec((te, 1), edge_map),               # src tile
            pl.BlockSpec((1, te), lambda l, t: (0, t)),    # dst tile
            pl.BlockSpec((n_pad, fp), node_map),           # x (resident)
            pl.BlockSpec((te, ep), edge_map),              # edge_attr tile
            pl.BlockSpec((None, fp, fp), layer_map),       # wmx
            pl.BlockSpec((None, ep, fp), layer_map),       # wme
            pl.BlockSpec((None, 1, fp), layer_map),        # bm
            pl.BlockSpec((None, fp, fp), layer_map),       # waa
            pl.BlockSpec((None, fp, fp), layer_map),       # wax
            pl.BlockSpec((None, 1, fp), layer_map),        # ba
        ],
        out_specs=pl.BlockSpec((n_pad, fp), node_map),
        scratch_shapes=[
            pltpu.VMEM((n_pad, fp), jnp.float32),   # cur node features (x / h)
            pltpu.VMEM((n_pad, fp), jnp.float32),   # aggr accumulator
        ],
    )

    # Advisory cost estimate.
    per_tile_flops = 2 * (te * n_pad * fp          # gather
                          + te * fp * fp           # message (x_j part)
                          + te * ep * fp           # message (edge part)
                          + n_pad * te * fp)       # scatter-add
    per_layer_flops = n_tiles * per_tile_flops + 2 * (2 * n_pad * fp * fp)
    bytes_accessed = 4 * (x_pad.size + 2 * (e_attr_pad.size + e_pad + e_pad)
                          + wmx.size + wme.size + bm.size
                          + waa.size + wax.size + ba.size + n_pad * fp)
    cost = pl.CostEstimate(flops=int(n_layers * per_layer_flops),
                           transcendentals=0,
                           bytes_accessed=int(bytes_accessed))

    # VMEM budget (double-buffered edge tiles + weights + resident node data).
    vmem_need = 4 * (2 * (te + te + te * ep)
                     + 2 * (4 * fp * fp + 2 * fp)
                     + 3 * n_pad * fp               # x block + 2 scratch
                     + n_pad * fp                   # output block
                     + 2 * te * n_pad + 2 * te * fp)  # one-hot + MLP temps
    vmem_limit = int(min(48 * 1024 * 1024, max(16 * 1024 * 1024, 2 * vmem_need)))

    out_pad = pl.pallas_call(
        fused_txgnn_kernel,
        out_shape=jax.ShapeDtypeStruct((n_pad, fp), jnp.float32),
        grid_spec=grid_spec,
        compiler_params=pltpu.CompilerParams(
            dimension_semantics=("arbitrary", "arbitrary"),
            vmem_limit_bytes=vmem_limit),
        cost_estimate=cost,
    )(src2d, dst2d, x_pad, e_attr_pad, wmx, wme, bm, waa, wax, ba)

    return out_pad[:N, :out_dim]


@jax.jit
def txgnn_forward(x, src, dst, edge_attr, params1, params2):
    return txgnn_pallas(x, src, dst, edge_attr, params1, params2)


# ----------------------------------------------------------------------------
# Parameter init (deterministic, torch.nn.Linear-style uniform init),
# weights stored transposed as [in_features, out_features].
# ----------------------------------------------------------------------------
def init_linear(key, fan_in, fan_out):
    kw, kb = jax.random.split(key)
    bound = 1.0 / jnp.sqrt(jnp.float32(fan_in))
    w_t = jax.random.uniform(kw, (fan_in, fan_out), jnp.float32, -bound, bound)
    b = jax.random.uniform(kb, (1, fan_out), jnp.float32, -bound, bound)
    return w_t, b


def init_edge_sage(key, in_ch, out_ch, edge_ch):
    k1, k2 = jax.random.split(key)
    # message_lin: Linear(in_ch + edge_ch, out_ch), input = cat(x_j, edge_attr)
    wm_t, bm = init_linear(k1, in_ch + edge_ch, out_ch)
    # aggr_lin: Linear(out_ch + in_ch, out_ch), input = cat(aggr_out, x)
    wa_t, ba = init_linear(k2, in_ch + out_ch, out_ch)
    return {
        "wmx": wm_t[:in_ch],      # multiplies x_j part
        "wme": wm_t[in_ch:],      # multiplies edge_attr part
        "bm": bm,
        "waa": wa_t[:out_ch],     # multiplies aggr_out part
        "wax": wa_t[out_ch:],     # multiplies x part
        "ba": ba,
    }


# ----------------------------------------------------------------------------
# Pure-JAX reference (PyG EdgeSAGEConv semantics) for verification
# ----------------------------------------------------------------------------
def edge_sage_ref(x, src, dst, edge_attr, params):
    N = x.shape[0]
    x_j = x[src]
    wm = jnp.concatenate([params["wmx"], params["wme"]], axis=0)
    m = jnp.maximum(
        jnp.concatenate([x_j, edge_attr], axis=-1) @ wm + params["bm"], 0.0)
    aggr = jax.ops.segment_sum(m, dst, num_segments=N)
    wa = jnp.concatenate([params["waa"], params["wax"]], axis=0)
    out = jnp.maximum(
        jnp.concatenate([aggr, x], axis=-1) @ wa + params["ba"], 0.0)
    return out


def txgnn_ref(x, src, dst, edge_attr, params1, params2):
    h = edge_sage_ref(x, src, dst, edge_attr, params1)
    h = jnp.maximum(h, 0.0)
    return edge_sage_ref(h, src, dst, edge_attr, params2)


if __name__ == "__main__":
    # Small synthetic graph (multiple edge tiles to exercise the accumulator).
    N = 40          # nodes
    E = 300         # edges  -> 3 edge tiles of 128 (padded)
    input_dim = 8
    hidden_dim = 16
    output_dim = 8
    edge_dim = 4

    key = jax.random.PRNGKey(0)
    kx, ke, ks, kd, kp1, kp2 = jax.random.split(key, 6)

    x = jax.random.normal(kx, (N, input_dim), jnp.float32)
    edge_attr = jax.random.normal(ke, (E, edge_dim), jnp.float32)
    src = jax.random.randint(ks, (E,), 0, N, dtype=jnp.int32)  # edge_index[0]
    dst = jax.random.randint(kd, (E,), 0, N, dtype=jnp.int32)  # edge_index[1]

    params1 = init_edge_sage(kp1, input_dim, hidden_dim, edge_dim)
    params2 = init_edge_sage(kp2, hidden_dim, output_dim, edge_dim)

    out = txgnn_forward(x, src, dst, edge_attr, params1, params2)
    out = jax.block_until_ready(out)

    ref = txgnn_ref(x, src, dst, edge_attr, params1, params2)
    assert out.shape == (N, output_dim)
    assert jnp.allclose(out, ref, atol=1e-4, rtol=1e-4), "mismatch vs reference"

    print("KERNEL_OK")
</pallas_src>

<mosaic_0001>
module attributes {stable_mosaic.version = 11 : i64} {
  func.func @fused_txgnn_kernel(%arg0: i32, %arg1: i32, %arg2: memref<128x1xi32, #tpu.memory_space<vmem>>, %arg3: memref<1x128xi32, #tpu.memory_space<vmem>>, %arg4: memref<40x128xf32, #tpu.memory_space<vmem>>, %arg5: memref<128x128xf32, #tpu.memory_space<vmem>>, %arg6: memref<1x128x128xf32, #tpu.memory_space<vmem>>, %arg7: memref<1x128x128xf32, #tpu.memory_space<vmem>>, %arg8: memref<1x1x128xf32, #tpu.memory_space<vmem>>, %arg9: memref<1x128x128xf32, #tpu.memory_space<vmem>>, %arg10: memref<1x128x128xf32, #tpu.memory_space<vmem>>, %arg11: memref<1x1x128xf32, #tpu.memory_space<vmem>>, %arg12: memref<40x128xf32, #tpu.memory_space<vmem>>, %arg13: memref<40x128xf32, #tpu.memory_space<vmem>>, %arg14: memref<40x128xf32, #tpu.memory_space<vmem>>) attributes {dimension_semantics = [#tpu.dimension_semantics<arbitrary>, #tpu.dimension_semantics<arbitrary>], iteration_bounds = array<i64: 2, 3>, scalar_prefetch = 0 : i64, scratch_operands = 2 : i64, tpu.core_type = #tpu.core_type<tc>, window_params = [{transform_indices = @transform_0, window_bounds = array<i64: 128, 1>}, {transform_indices = @transform_1, window_bounds = array<i64: 1, 128>}, {pipeline_mode = #tpu.pipeline_mode<synchronous>, transform_indices = @transform_2, window_bounds = array<i64: 40, 128>}, {transform_indices = @transform_3, window_bounds = array<i64: 128, 128>}, {transform_indices = @transform_4, window_bounds = array<i64: 1, 128, 128>}, {transform_indices = @transform_5, window_bounds = array<i64: 1, 128, 128>}, {transform_indices = @transform_6, window_bounds = array<i64: 1, 1, 128>}, {transform_indices = @transform_7, window_bounds = array<i64: 1, 128, 128>}, {transform_indices = @transform_8, window_bounds = array<i64: 1, 128, 128>}, {transform_indices = @transform_9, window_bounds = array<i64: 1, 1, 128>}, {pipeline_mode = #tpu.pipeline_mode<synchronous>, transform_indices = @transform_10, window_bounds = array<i64: 40, 128>}]} {
    %c0_i32 = arith.constant 0 : i32
    %0 = arith.cmpi eq, %arg0, %c0_i32 : i32
    %c0_i32_0 = arith.constant 0 : i32
    %1 = arith.cmpi eq, %arg1, %c0_i32_0 : i32
    %2 = arith.andi %0, %1 : i1
    %3 = arith.extui %2 : i1 to i32
    %c0_i32_1 = arith.constant 0 : i32
    %4 = arith.cmpi ne, %3, %c0_i32_1 : i32
    scf.if %4 {
      %c0_29 = arith.constant 0 : index
      %c0_30 = arith.constant 0 : index
      %43 = vector.load %arg4[%c0_29, %c0_30] : memref<40x128xf32, #tpu.memory_space<vmem>>, vector<40x128xf32>
      %c0_31 = arith.constant 0 : index
      %c0_32 = arith.constant 0 : index
      %44 = vector.load %arg13[%c0_31, %c0_32] : memref<40x128xf32, #tpu.memory_space<vmem>>, vector<40x128xf32>
      tpu.vector_store %arg13[%c0_31, %c0_32], %43 {strides = array<i32>} : memref<40x128xf32, #tpu.memory_space<vmem>>, vector<40x128xf32>,
    } else {
    }
    %c0_i32_2 = arith.constant 0 : i32
    %5 = arith.cmpi eq, %arg1, %c0_i32_2 : i32
    %6 = arith.extui %5 : i1 to i32
    %c0_i32_3 = arith.constant 0 : i32
    %7 = arith.cmpi ne, %6, %c0_i32_3 : i32
    scf.if %7 {
      %cst_29 = arith.constant 0.000000e+00 : f32
      %43 = vector.broadcast %cst_29 : f32 to vector<40x128xf32>
      %c0_30 = arith.constant 0 : index
      %c0_31 = arith.constant 0 : index
      %44 = vector.load %arg14[%c0_30, %c0_31] : memref<40x128xf32, #tpu.memory_space<vmem>>, vector<40x128xf32>
      tpu.vector_store %arg14[%c0_30, %c0_31], %43 {strides = array<i32>} : memref<40x128xf32, #tpu.memory_space<vmem>>, vector<40x128xf32>,
    } else {
    }
    %c0 = arith.constant 0 : index
    %c0_4 = arith.constant 0 : index
    %8 = vector.load %arg2[%c0, %c0_4] : memref<128x1xi32, #tpu.memory_space<vmem>>, vector<128x1xi32>
    %c0_5 = arith.constant 0 : index
    %c0_6 = arith.constant 0 : index
    %9 = vector.load %arg3[%c0_5, %c0_6] : memref<1x128xi32, #tpu.memory_space<vmem>>, vector<1x128xi32>
    %10 = tpu.iota {dimensions = array<i32: 1>} : vector<128x40xi32>
    %11 = vector.broadcast %8 : vector<128x1xi32> to vector<128x40xi32>
    %12 = arith.cmpi eq, %10, %11 : vector<128x40xi32>
    %13 = arith.extui %12 : vector<128x40xi1> to vector<128x40xi32>
    %14 = arith.sitofp %13 : vector<128x40xi32> to vector<128x40xf32>
    %c0_7 = arith.constant 0 : index
    %c0_8 = arith.constant 0 : index
    %15 = vector.load %arg13[%c0_7, %c0_8] : memref<40x128xf32, #tpu.memory_space<vmem>>, vector<40x128xf32>
    %cst = arith.constant dense<0.000000e+00> : vector<128x128xf32>
    %16 = tpu.matmul %14, %15, %cst {dimension_numbers = #tpu.dot_dimension_numbers<[1], [0], [0], [1], [0, 0, 1, 1], [], []>} : vector<128x40xf32>, vector<40x128xf32>, vector<128x128xf32> -> vector<128x128xf32>
    %c0_9 = arith.constant 0 : index
    %c0_10 = arith.constant 0 : index
    %c0_11 = arith.constant 0 : index
    %17 = vector.load %arg6[%c0_9, %c0_10, %c0_11] : memref<1x128x128xf32, #tpu.memory_space<vmem>>, vector<1x128x128xf32>
    %18 = vector.shape_cast %17 : vector<1x128x128xf32> to vector<128x128xf32>
    %cst_12 = arith.constant dense<0.000000e+00> : vector<128x128xf32>
    %19 = tpu.matmul %16, %18, %cst_12 {dimension_numbers = #tpu.dot_dimension_numbers<[1], [0], [0], [1], [0, 0, 1, 1], [], []>} : vector<128x128xf32>, vector<128x128xf32>, vector<128x128xf32> -> vector<128x128xf32>
    %c0_13 = arith.constant 0 : index
    %c0_14 = arith.constant 0 : index
    %20 = vector.load %arg5[%c0_13, %c0_14] : memref<128x128xf32, #tpu.memory_space<vmem>>, vector<128x128xf32>
    %c0_15 = arith.constant 0 : index
    %c0_16 = arith.constant 0 : index
    %c0_17 = arith.constant 0 : index
    %21 = vector.load %arg7[%c0_15, %c0_16, %c0_17] : memref<1x128x128xf32, #tpu.memory_space<vmem>>, vector<1x128x128xf32>
    %22 = vector.shape_cast %21 : vector<1x128x128xf32> to vector<128x128xf32>
    %cst_18 = arith.constant dense<0.000000e+00> : vector<128x128xf32>
    %23 = tpu.matmul %20, %22, %cst_18 {dimension_numbers = #tpu.dot_dimension_numbers<[1], [0], [0], [1], [0, 0, 1, 1], [], []>} : vector<128x128xf32>, vector<128x128xf32>, vector<128x128xf32> -> vector<128x128xf32>
    %24 = arith.addf %19, %23 : vector<128x128xf32>
    %c0_19 = arith.constant 0 : index
    %c0_20 = arith.constant 0 : index
    %c0_21 = arith.constant 0 : index
    %25 = vector.load %arg8[%c0_19, %c0_20, %c0_21] : memref<1x1x128xf32, #tpu.memory_space<vmem>>, vector<1x1x128xf32>
    %26 = vector.shape_cast %25 : vector<1x1x128xf32> to vector<1x128xf32>
    %27 = vector.broadcast %26 : vector<1x128xf32> to vector<128x128xf32>
    %28 = arith.addf %24, %27 : vector<128x128xf32>
    %cst_22 = arith.constant 0.000000e+00 : f32
    %29 = vector.broadcast %cst_22 : f32 to vector<128x128xf32>
    %30 = arith.maximumf %28, %29 : vector<128x128xf32>
    %31 = tpu.iota {dimensions = array<i32: 0>} : vector<40x128xi32>
    %32 = vector.broadcast %9 : vector<1x128xi32> to vector<40x128xi32>
    %33 = arith.cmpi eq, %31, %32 : vector<40x128xi32>
    %34 = arith.extui %33 : vector<40x128xi1> to vector<40x128xi32>
    %35 = arith.sitofp %34 : vector<40x128xi32> to vector<40x128xf32>
    %c0_23 = arith.constant 0 : index
    %c0_24 = arith.constant 0 : index
    %36 = vector.load %arg14[%c0_23, %c0_24] : memref<40x128xf32, #tpu.memory_space<vmem>>, vector<40x128xf32>
    %cst_25 = arith.constant dense<0.000000e+00> : vector<40x128xf32>
    %37 = tpu.matmul %35, %30, %cst_25 {dimension_numbers = #tpu.dot_dimension_numbers<[1], [0], [0], [1], [0, 0, 1, 1], [], []>} : vector<40x128xf32>, vector<128x128xf32>, vector<40x128xf32> -> vector<40x128xf32>
    %38 = arith.addf %36, %37 : vector<40x128xf32>
    %c0_26 = arith.constant 0 : index
    %c0_27 = arith.constant 0 : index
    %39 = vector.load %arg14[%c0_26, %c0_27] : memref<40x128xf32, #tpu.memory_space<vmem>>, vector<40x128xf32>
    tpu.vector_store %arg14[%c0_26, %c0_27], %38 {strides = array<i32>} : memref<40x128xf32, #tpu.memory_space<vmem>>, vector<40x128xf32>,
    %c2_i32 = arith.constant 2 : i32
    %40 = arith.cmpi eq, %arg1, %c2_i32 : i32
    %41 = arith.extui %40 : i1 to i32
    %c0_i32_28 = arith.constant 0 : i32
    %42 = arith.cmpi ne, %41, %c0_i32_28 : i32
    scf.if %42 {
      %c0_29 = arith.constant 0 : index
      %c0_30 = arith.constant 0 : index
      %43 = vector.load %arg14[%c0_29, %c0_30] : memref<40x128xf32, #tpu.memory_space<vmem>>, vector<40x128xf32>
      %c0_31 = arith.constant 0 : index
      %c0_32 = arith.constant 0 : index
      %c0_33 = arith.constant 0 : index
      %44 = vector.load %arg9[%c0_31, %c0_32, %c0_33] : memref<1x128x128xf32, #tpu.memory_space<vmem>>, vector<1x128x128xf32>
      %45 = vector.shape_cast %44 : vector<1x128x128xf32> to vector<128x128xf32>
      %cst_34 = arith.constant dense<0.000000e+00> : vector<40x128xf32>
      %46 = tpu.matmul %43, %45, %cst_34 {dimension_numbers = #tpu.dot_dimension_numbers<[1], [0], [0], [1], [0, 0, 1, 1], [], []>} : vector<40x128xf32>, vector<128x128xf32>, vector<40x128xf32> -> vector<40x128xf32>
      %c0_35 = arith.constant 0 : index
      %c0_36 = arith.constant 0 : index
      %47 = vector.load %arg13[%c0_35, %c0_36] : memref<40x128xf32, #tpu.memory_space<vmem>>, vector<40x128xf32>
      %c0_37 = arith.constant 0 : index
      %c0_38 = arith.constant 0 : index
      %c0_39 = arith.constant 0 : index
      %48 = vector.load %arg10[%c0_37, %c0_38, %c0_39] : memref<1x128x128xf32, #tpu.memory_space<vmem>>, vector<1x128x128xf32>
      %49 = vector.shape_cast %48 : vector<1x128x128xf32> to vector<128x128xf32>
      %cst_40 = arith.constant dense<0.000000e+00> : vector<40x128xf32>
      %50 = tpu.matmul %47, %49, %cst_40 {dimension_numbers = #tpu.dot_dimension_numbers<[1], [0], [0], [1], [0, 0, 1, 1], [], []>} : vector<40x128xf32>, vector<128x128xf32>, vector<40x128xf32> -> vector<40x128xf32>
      %51 = arith.addf %46, %50 : vector<40x128xf32>
      %c0_41 = arith.constant 0 : index
      %c0_42 = arith.constant 0 : index
      %c0_43 = arith.constant 0 : index
      %52 = vector.load %arg11[%c0_41, %c0_42, %c0_43] : memref<1x1x128xf32, #tpu.memory_space<vmem>>, vector<1x1x128xf32>
      %53 = vector.shape_cast %52 : vector<1x1x128xf32> to vector<1x128xf32>
      %54 = vector.broadcast %53 : vector<1x128xf32> to vector<40x128xf32>
      %55 = arith.addf %51, %54 : vector<40x128xf32>
      %cst_44 = arith.constant 0.000000e+00 : f32
      %56 = vector.broadcast %cst_44 : f32 to vector<40x128xf32>
      %57 = arith.maximumf %55, %56 : vector<40x128xf32>
      %c0_45 = arith.constant 0 : index
      %c0_46 = arith.constant 0 : index
      %58 = vector.load %arg13[%c0_45, %c0_46] : memref<40x128xf32, #tpu.memory_space<vmem>>, vector<40x128xf32>
      tpu.vector_store %arg13[%c0_45, %c0_46], %57 {strides = array<i32>} : memref<40x128xf32, #tpu.memory_space<vmem>>, vector<40x128xf32>,
      %c0_47 = arith.constant 0 : index
      %c0_48 = arith.constant 0 : index
      %59 = vector.load %arg12[%c0_47, %c0_48] : memref<40x128xf32, #tpu.memory_space<vmem>>, vector<40x128xf32>
      tpu.vector_store %arg12[%c0_47, %c0_48], %57 {strides = array<i32>} : memref<40x128xf32, #tpu.memory_space<vmem>>, vector<40x128xf32>,
    } else {
    }
    return
  }
  func.func @transform_0(%arg0: i32, %arg1: i32) -> (i32, i32) {
    %c0_i32 = arith.constant 0 : i32
    %c0_i32_0 = arith.constant 0 : i32
    return %arg1, %c0_i32 : i32, i32
  }
  func.func @transform_1(%arg0: i32, %arg1: i32) -> (i32, i32) {
    %c0_i32 = arith.constant 0 : i32
    %c0_i32_0 = arith.constant 0 : i32
    return %c0_i32, %arg1 : i32, i32
  }
  func.func @transform_2(%arg0: i32, %arg1: i32) -> (i32, i32) {
    %c0_i32 = arith.constant 0 : i32
    %c0_i32_0 = arith.constant 0 : i32
    %c0_i32_1 = arith.constant 0 : i32
    return %c0_i32, %c0_i32_0 : i32, i32
  }
  func.func @transform_3(%arg0: i32, %arg1: i32) -> (i32, i32) {
    %c0_i32 = arith.constant 0 : i32
    %c0_i32_0 = arith.constant 0 : i32
    return %arg1, %c0_i32 : i32, i32
  }
  func.func @transform_4(%arg0: i32, %arg1: i32) -> (i32, i32, i32) {
    %c0_i32 = arith.constant 0 : i32
    %c0_i32_0 = arith.constant 0 : i32
    %c0_i32_1 = arith.constant 0 : i32
    return %arg0, %c0_i32, %c0_i32_0 : i32, i32, i32
  }
  func.func @transform_5(%arg0: i32, %arg1: i32) -> (i32, i32, i32) {
    %c0_i32 = arith.constant 0 : i32
    %c0_i32_0 = arith.constant 0 : i32
    %c0_i32_1 = arith.constant 0 : i32
    return %arg0, %c0_i32, %c0_i32_0 : i32, i32, i32
  }
  func.func @transform_6(%arg0: i32, %arg1: i32) -> (i32, i32, i32) {
    %c0_i32 = arith.constant 0 : i32
    %c0_i32_0 = arith.constant 0 : i32
    %c0_i32_1 = arith.constant 0 : i32
    return %arg0, %c0_i32, %c0_i32_0 : i32, i32, i32
  }
  func.func @transform_7(%arg0: i32, %arg1: i32) -> (i32, i32, i32) {
    %c0_i32 = arith.constant 0 : i32
    %c0_i32_0 = arith.constant 0 : i32
    %c0_i32_1 = arith.constant 0 : i32
    return %arg0, %c0_i32, %c0_i32_0 : i32, i32, i32
  }
  func.func @transform_8(%arg0: i32, %arg1: i32) -> (i32, i32, i32) {
    %c0_i32 = arith.constant 0 : i32
    %c0_i32_0 = arith.constant 0 : i32
    %c0_i32_1 = arith.constant 0 : i32
    return %arg0, %c0_i32, %c0_i32_0 : i32, i32, i32
  }
  func.func @transform_9(%arg0: i32, %arg1: i32) -> (i32, i32, i32) {
    %c0_i32 = arith.constant 0 : i32
    %c0_i32_0 = arith.constant 0 : i32
    %c0_i32_1 = arith.constant 0 : i32
    return %arg0, %c0_i32, %c0_i32_0 : i32, i32, i32
  }
  func.func @transform_10(%arg0: i32, %arg1: i32) -> (i32, i32) {
    %c0_i32 = arith.constant 0 : i32
    %c0_i32_0 = arith.constant 0 : i32
    %c0_i32_1 = arith.constant 0 : i32
    return %c0_i32, %c0_i32_0 : i32, i32
  }
}

</mosaic_0001>

<llo_original>
// kernel: txgnn_forward.1
$region0: #{txgnn_forward.1}
  #allocation0 [shape = 'u32[]', space=smem, size = 0x4, offset = 0x4, fixed_abs, tag = 'smem constant byte address 0x4 - core index']
  #allocation1 [shape = 'u32[72,128]{1,0:T(1,128)}', space=vmem, size = 0x9000, scoped, tag = 'internal scratch']
  #allocation2 [shape = 'f32[40,128]{1,0:T(8,128)}', space=vmem, size = 0x5000, scoped, tag = 'scratch operand']
  #allocation3 [shape = 'f32[40,128]{1,0:T(8,128)}', space=vmem, size = 0x5000, scoped, tag = 'scratch operand']
  %s0 = inlined_call_operand.vmem [shape: s32[384,1], index: 0, kind: input, shape index: {}]
  %s1 = inlined_call_operand.vmem [shape: s32[1,384], index: 1, kind: input, shape index: {}]
  %s2 = inlined_call_operand.vmem [shape: f32[40,128], index: 2, kind: input, shape index: {}]
  %s3 = inlined_call_operand.vmem [shape: f32[384,128], index: 3, kind: input, shape index: {}]
  %s4 = inlined_call_operand.vmem [shape: f32[2,128,128], index: 4, kind: input, shape index: {}]
  %s5 = inlined_call_operand.vmem [shape: f32[2,128,128], index: 5, kind: input, shape index: {}]
  %s6 = inlined_call_operand.vmem [shape: f32[2,1,128], index: 6, kind: input, shape index: {}]
  %s7 = inlined_call_operand.vmem [shape: f32[2,128,128], index: 7, kind: input, shape index: {}]
  %s8 = inlined_call_operand.vmem [shape: f32[2,128,128], index: 8, kind: input, shape index: {}]
  %s9 = inlined_call_operand.vmem [shape: f32[2,1,128], index: 9, kind: input, shape index: {}]
  %s10 = inlined_call_operand.vmem [shape: f32[40,128], index: 10, kind: output, shape index: {}]
  %s11 = sld [smem:[#allocation0]]
  $region85: #{txgnn_forward.1} parent=0
    _
  %s13 = ssub.s32 1, %s11
  %s14 = scalar_select 0, %s13, %s11
  loop: start=0, step=1, limit=8
  $region2: #{txgnn_forward.1} parent=0 // loop_pre_header
    _
  $region3: #{txgnn_forward.1} parent=0 // loop_header
    %s16 = sphi 0, %s20
    %p17 = scmp.ge.s32.totalorder %s16, 8
    %s23 = sphi 0, %s35
    %s24 = sphi 0, %s31
    %s25 = sphi 0, %s23
    %s26 = sphi 0, %s24
    %s27 = sphi 0, %s25
    %s28 = sphi 0, %s26
    %s38 = sphi 0, %s40
    %s41 = sphi 0, %s38
    %s42 = sphi 0, %s41
    %s58 = sphi 0, %s42
    %s64 = sphi 0, %s66
    %s67 = sphi 0, %s64
    %s68 = sphi 0, %s67
    %s84 = sphi 0, %s68
    %s88 = sphi 0, %s88
    %s90 = sphi 0, %s88
    %s91 = sphi 0, %s90
    %s105 = sphi 0, %s91
    %s111 = sphi 0, %s113
    %s114 = sphi 0, %s111
    %s115 = sphi 0, %s114
    %s131 = sphi 0, %s115
    %s137 = sphi 0, %s139
    %s140 = sphi 0, %s137
    %s141 = sphi 0, %s140
    %s157 = sphi 0, %s141
    %s163 = sphi 0, %s165
    %s166 = sphi 0, %s163
    %s167 = sphi 0, %s166
    %s183 = sphi 0, %s167
    %s189 = sphi 0, %s191
    %s192 = sphi 0, %s189
    %s193 = sphi 0, %s192
    %s209 = sphi 0, %s193
    %s215 = sphi 0, %s217
    %s218 = sphi 0, %s215
    %s219 = sphi 0, %s218
    %s235 = sphi 0, %s219
    %s241 = sphi 0, %s243
    %s244 = sphi 0, %s241
    %s245 = sphi 0, %s244
    %s261 = sphi 0, %s245
    %s267 = sphi 0, %s269
    %s270 = sphi 0, %s267
    %s271 = sphi 0, %s270
    %s287 = sphi 0, %s271
    %s291 = sphi 0, %s291
    %s293 = sphi 0, %s291
    %s294 = sphi 0, %s293
    %s308 = sphi 0, %s294
  $region4: #{txgnn_forward.1} parent=0 // loop_header_branch
    %19 = sbr.rel (%p17) target = $region8
  $region5: #{txgnn_forward.1} parent=0 // loop_body
    %s21 = ssub.s32 %s16, 1
    %s22 = ssub.s32 %s16, 2
    %s29 = sadd.s32 1, %s24
    %p30 = scmp.ge.s32.totalorder %s29, 3
    %s31 = scalar_select %p30, 0, %s29
    %s32 = sadd.s32 1, %s23
    %s33 = scalar_select %p30, %s32, %s23
    %p34 = scmp.ge.s32.totalorder %s33, 2
    %s35 = scalar_select %p34, 0, %s33
    %s36 = ssub.s32 %s24, %s31
    %p37 = scmp.eq.s32.totalorder %s36, 0
    %s39 = sadd.s32 %s38, 1
    %s40 = scalar_select %p37, %s38, %s39
    %p43 = pneg %p37
    %p44 = scmp.eq.s32.totalorder %s16, 5
    %p45 = por %p43, %p44
    %p46 = scmp.ne.s32.totalorder %s38, %s41
    %p47 = scmp.eq.s32.totalorder %s16, 0
    %p48 = por %p46, %p47
    %p49 = scmp.ne.s32.totalorder %s38, %s41
    %p50 = scmp.eq.s32.totalorder %s21, 5
    %p51 = por %p49, %p50
    %p52 = scmp.ne.s32.totalorder %s41, %s42
    %p53 = scmp.eq.s32.totalorder %s21, 0
    %p54 = por %p52, %p53
    %p55 = scmp.ne.s32.totalorder %s41, %s42
    %p56 = scmp.eq.s32.totalorder %s22, 5
    %p57 = por %p55, %p56
    %p59 = scmp.ne.s32.totalorder %s42, %s58
    %p60 = scmp.eq.s32.totalorder %s22, 0
    %p61 = por %p59, %p60
    %s62 = ssub.s32 %s24, %s31
    %p63 = scmp.eq.s32.totalorder %s62, 0
    %s65 = sadd.s32 %s64, 1
    %s66 = scalar_select %p63, %s64, %s65
    %p69 = pneg %p63
    %p70 = scmp.eq.s32.totalorder %s16, 5
    %p71 = por %p69, %p70
    %p72 = scmp.ne.s32.totalorder %s64, %s67
    %p73 = scmp.eq.s32.totalorder %s16, 0
    %p74 = por %p72, %p73
    %p75 = scmp.ne.s32.totalorder %s64, %s67
    %p76 = scmp.eq.s32.totalorder %s21, 5
    %p77 = por %p75, %p76
    %p78 = scmp.ne.s32.totalorder %s67, %s68
    %p79 = scmp.eq.s32.totalorder %s21, 0
    %p80 = por %p78, %p79
    %p81 = scmp.ne.s32.totalorder %s67, %s68
    %p82 = scmp.eq.s32.totalorder %s22, 5
    %p83 = por %p81, %p82
    %p85 = scmp.ne.s32.totalorder %s68, %s84
    %p86 = scmp.eq.s32.totalorder %s22, 0
    %p87 = por %p85, %p86
    %s89 = sadd.s32 %s88, 1
    %p92 = scmp.eq.s32.totalorder %s16, 5
    %p93 = scmp.ne.s32.totalorder %s88, %s90
    %p94 = scmp.eq.s32.totalorder %s16, 0
    %p95 = por %p93, %p94
    %p96 = scmp.ne.s32.totalorder %s88, %s90
    %p97 = scmp.eq.s32.totalorder %s21, 5
    %p98 = por %p96, %p97
    %p99 = scmp.ne.s32.totalorder %s90, %s91
    %p100 = scmp.eq.s32.totalorder %s21, 0
    %p101 = por %p99, %p100
    %p102 = scmp.ne.s32.totalorder %s90, %s91
    %p103 = scmp.eq.s32.totalorder %s22, 5
    %p104 = por %p102, %p103
    %p106 = scmp.ne.s32.totalorder %s91, %s105
    %p107 = scmp.eq.s32.totalorder %s22, 0
    %p108 = por %p106, %p107
    %s109 = ssub.s32 %s24, %s31
    %p110 = scmp.eq.s32.totalorder %s109, 0
    %s112 = sadd.s32 %s111, 1
    %s113 = scalar_select %p110, %s111, %s112
    %p116 = pneg %p110
    %p117 = scmp.eq.s32.totalorder %s16, 5
    %p118 = por %p116, %p117
    %p119 = scmp.ne.s32.totalorder %s111, %s114
    %p120 = scmp.eq.s32.totalorder %s16, 0
    %p121 = por %p119, %p120
    %p122 = scmp.ne.s32.totalorder %s111, %s114
    %p123 = scmp.eq.s32.totalorder %s21, 5
    %p124 = por %p122, %p123
    %p125 = scmp.ne.s32.totalorder %s114, %s115
    %p126 = scmp.eq.s32.totalorder %s21, 0
    %p127 = por %p125, %p126
    %p128 = scmp.ne.s32.totalorder %s114, %s115
    %p129 = scmp.eq.s32.totalorder %s22, 5
    %p130 = por %p128, %p129
    %p132 = scmp.ne.s32.totalorder %s115, %s131
    %p133 = scmp.eq.s32.totalorder %s22, 0
    %p134 = por %p132, %p133
    %s135 = ssub.s32 %s23, %s35
    %p136 = scmp.eq.s32.totalorder %s135, 0
    %s138 = sadd.s32 %s137, 1
    %s139 = scalar_select %p136, %s137, %s138
    %p142 = pneg %p136
    %p143 = scmp.eq.s32.totalorder %s16, 5
    %p144 = por %p142, %p143
    %p145 = scmp.ne.s32.totalorder %s137, %s140
    %p146 = scmp.eq.s32.totalorder %s16, 0
    %p147 = por %p145, %p146
    %p148 = scmp.ne.s32.totalorder %s137, %s140
    %p149 = scmp.eq.s32.totalorder %s21, 5
    %p150 = por %p148, %p149
    %p151 = scmp.ne.s32.totalorder %s140, %s141
    %p152 = scmp.eq.s32.totalorder %s21, 0
    %p153 = por %p151, %p152
    %p154 = scmp.ne.s32.totalorder %s140, %s141
    %p155 = scmp.eq.s32.totalorder %s22, 5
    %p156 = por %p154, %p155
    %p158 = scmp.ne.s32.totalorder %s141, %s157
    %p159 = scmp.eq.s32.totalorder %s22, 0
    %p160 = por %p158, %p159
    %s161 = ssub.s32 %s23, %s35
    %p162 = scmp.eq.s32.totalorder %s161, 0
    %s164 = sadd.s32 %s163, 1
    %s165 = scalar_select %p162, %s163, %s164
    %p168 = pneg %p162
    %p169 = scmp.eq.s32.totalorder %s16, 5
    %p170 = por %p168, %p169
    %p171 = scmp.ne.s32.totalorder %s163, %s166
    %p172 = scmp.eq.s32.totalorder %s16, 0
    %p173 = por %p171, %p172
    %p174 = scmp.ne.s32.totalorder %s163, %s166
    %p175 = scmp.eq.s32.totalorder %s21, 5
    %p176 = por %p174, %p175
    %p177 = scmp.ne.s32.totalorder %s166, %s167
    %p178 = scmp.eq.s32.totalorder %s21, 0
    %p179 = por %p177, %p178
    %p180 = scmp.ne.s32.totalorder %s166, %s167
    %p181 = scmp.eq.s32.totalorder %s22, 5
    %p182 = por %p180, %p181
    %p184 = scmp.ne.s32.totalorder %s167, %s183
    %p185 = scmp.eq.s32.totalorder %s22, 0
    %p186 = por %p184, %p185
    %s187 = ssub.s32 %s23, %s35
    %p188 = scmp.eq.s32.totalorder %s187, 0
    %s190 = sadd.s32 %s189, 1
    %s191 = scalar_select %p188, %s189, %s190
    %p194 = pneg %p188
    %p195 = scmp.eq.s32.totalorder %s16, 5
    %p196 = por %p194, %p195
    %p197 = scmp.ne.s32.totalorder %s189, %s192
    %p198 = scmp.eq.s32.totalorder %s16, 0
    %p199 = por %p197, %p198
    %p200 = scmp.ne.s32.totalorder %s189, %s192
    %p201 = scmp.eq.s32.totalorder %s21, 5
    %p202 = por %p200, %p201
    %p203 = scmp.ne.s32.totalorder %s192, %s193
    %p204 = scmp.eq.s32.totalorder %s21, 0
    %p205 = por %p203, %p204
    %p206 = scmp.ne.s32.totalorder %s192, %s193
    %p207 = scmp.eq.s32.totalorder %s22, 5
    %p208 = por %p206, %p207
    %p210 = scmp.ne.s32.totalorder %s193, %s209
    %p211 = scmp.eq.s32.totalorder %s22, 0
    %p212 = por %p210, %p211
    %s213 = ssub.s32 %s23, %s35
    %p214 = scmp.eq.s32.totalorder %s213, 0
    %s216 = sadd.s32 %s215, 1
    %s217 = scalar_select %p214, %s215, %s216
    %p220 = pneg %p214
    %p221 = scmp.eq.s32.totalorder %s16, 5
    %p222 = por %p220, %p221
    %p223 = scmp.ne.s32.totalorder %s215, %s218
    %p224 = scmp.eq.s32.totalorder %s16, 0
    %p225 = por %p223, %p224
    %p226 = scmp.ne.s32.totalorder %s215, %s218
    %p227 = scmp.eq.s32.totalorder %s21, 5
    %p228 = por %p226, %p227
    %p229 = scmp.ne.s32.totalorder %s218, %s219
    %p230 = scmp.eq.s32.totalorder %s21, 0
    %p231 = por %p229, %p230
    %p232 = scmp.ne.s32.totalorder %s218, %s219
    %p233 = scmp.eq.s32.totalorder %s22, 5
    %p234 = por %p232, %p233
    %p236 = scmp.ne.s32.totalorder %s219, %s235
    %p237 = scmp.eq.s32.totalorder %s22, 0
    %p238 = por %p236, %p237
    %s239 = ssub.s32 %s23, %s35
    %p240 = scmp.eq.s32.totalorder %s239, 0
    %s242 = sadd.s32 %s241, 1
    %s243 = scalar_select %p240, %s241, %s242
    %p246 = pneg %p240
    %p247 = scmp.eq.s32.totalorder %s16, 5
    %p248 = por %p246, %p247
    %p249 = scmp.ne.s32.totalorder %s241, %s244
    %p250 = scmp.eq.s32.totalorder %s16, 0
    %p251 = por %p249, %p250
    %p252 = scmp.ne.s32.totalorder %s241, %s244
    %p253 = scmp.eq.s32.totalorder %s21, 5
    %p254 = por %p252, %p253
    %p255 = scmp.ne.s32.totalorder %s244, %s245
    %p256 = scmp.eq.s32.totalorder %s21, 0
    %p257 = por %p255, %p256
    %p258 = scmp.ne.s32.totalorder %s244, %s245
    %p259 = scmp.eq.s32.totalorder %s22, 5
    %p260 = por %p258, %p259
    %p262 = scmp.ne.s32.totalorder %s245, %s261
    %p263 = scmp.eq.s32.totalorder %s22, 0
    %p264 = por %p262, %p263
    %s265 = ssub.s32 %s23, %s35
    %p266 = scmp.eq.s32.totalorder %s265, 0
    %s268 = sadd.s32 %s267, 1
    %s269 = scalar_select %p266, %s267, %s268
    %p272 = pneg %p266
    %p273 = scmp.eq.s32.totalorder %s16, 5
    %p274 = por %p272, %p273
    %p275 = scmp.ne.s32.totalorder %s267, %s270
    %p276 = scmp.eq.s32.totalorder %s16, 0
    %p277 = por %p275, %p276
    %p278 = scmp.ne.s32.totalorder %s267, %s270
    %p279 = scmp.eq.s32.totalorder %s21, 5
    %p280 = por %p278, %p279
    %p281 = scmp.ne.s32.totalorder %s270, %s271
    %p282 = scmp.eq.s32.totalorder %s21, 0
    %p283 = por %p281, %p282
    %p284 = scmp.ne.s32.totalorder %s270, %s271
    %p285 = scmp.eq.s32.totalorder %s22, 5
    %p286 = por %p284, %p285
    %p288 = scmp.ne.s32.totalorder %s271, %s287
    %p289 = scmp.eq.s32.totalorder %s22, 0
    %p290 = por %p288, %p289
    %s292 = sadd.s32 %s291, 1
    %p295 = scmp.eq.s32.totalorder %s16, 5
    %p296 = scmp.ne.s32.totalorder %s291, %s293
    %p297 = scmp.eq.s32.totalorder %s16, 0
    %p298 = por %p296, %p297
    %p299 = scmp.ne.s32.totalorder %s291, %s293
    %p300 = scmp.eq.s32.totalorder %s21, 5
    %p301 = por %p299, %p300
    %p302 = scmp.ne.s32.totalorder %s293, %s294
    %p303 = scmp.eq.s32.totalorder %s21, 0
    %p304 = por %p302, %p303
    %p305 = scmp.ne.s32.totalorder %s293, %s294
    %p306 = scmp.eq.s32.totalorder %s22, 5
    %p307 = por %p305, %p306
    %p309 = scmp.ne.s32.totalorder %s294, %s308
    %p310 = scmp.eq.s32.totalorder %s22, 0
    %p311 = por %p309, %p310
    %p312 = scmp.le.s32.totalorder 1, %s16
    %p313 = scmp.lt.s32.totalorder %s16, 7
    %p314 = pnand %p312, %p313
    %p315 = pneg %p314
    // Predicated region
    $region9: #{txgnn_forward.1} parent=5 // pred_check
      _
    $region10: #{txgnn_forward.1} parent=5 // pred_check_branch
      %317 = sbr.rel (%p314) target = $region12
    $region11: #{txgnn_forward.1} parent=5 // pred_region
      %s318 = ssub.s32 %s16, 1
      // Predicated region
      $region13: #{txgnn_forward.1} parent=11 // pred_check
        %p319 = pneg %p101
      $region14: #{txgnn_forward.1} parent=11 // pred_check_branch
        %321 = sbr.rel (%p319) target = $region16
      $region15: #{txgnn_forward.1} parent=11 // pred_region
        _
      $region16: #{txgnn_forward.1} parent=11 // pred_fallthru
        _
    $region12: #{txgnn_forward.1} parent=5 // pred_fallthru
      _
    %p322 = scmp.lt.s32.totalorder %s16, 6
    // Predicated region
    $region17: #{txgnn_forward.1} parent=5 // pred_check
      %p323 = pneg %p322
    $region18: #{txgnn_forward.1} parent=5 // pred_check_branch
      %325 = sbr.rel (%p323) target = $region20
    $region19: #{txgnn_forward.1} parent=5 // pred_region
      // Predicated region
      $region21: #{txgnn_forward.1} parent=19 // pred_check
        %p326 = pneg %p48
      $region22: #{txgnn_forward.1} parent=19 // pred_check_branch
        %328 = sbr.rel (%p326) target = $region24
      $region23: #{txgnn_forward.1} parent=19 // pred_region
        %s329 = smul.u32 16, %s24
        %p330 = scmp.lt.s32.totalorder %s329, 47
        %s331 = scalar_select %p330, %s329, 47
        %s332 = smul.addr %s331, 8
        %s333 = scalar_lea.vmem %s0, %s332
        %s334 = smul.u32 16, %s24
      $region24: #{txgnn_forward.1} parent=19 // pred_fallthru
        _
      // Predicated region
      $region25: #{txgnn_forward.1} parent=19 // pred_check
        %p335 = pneg %p74
      $region26: #{txgnn_forward.1} parent=19 // pred_check_branch
        %337 = sbr.rel (%p335) target = $region28
      $region27: #{txgnn_forward.1} parent=19 // pred_region
        %p338 = scmp.lt.s32.totalorder %s24, 2
        %s339 = scalar_select %p338, %s24, 2
        %s340 = scalar_lea.vmem %s1, %s339
      $region28: #{txgnn_forward.1} parent=19 // pred_fallthru
        _
      // Predicated region
      $region29: #{txgnn_forward.1} parent=19 // pred_check
        %p341 = pneg %p121
      $region30: #{txgnn_forward.1} parent=19 // pred_check_branch
        %343 = sbr.rel (%p341) target = $region32
      $region31: #{txgnn_forward.1} parent=19 // pred_region
        %s344 = smul.u32 16, %s24
        %p345 = scmp.lt.s32.totalorder %s344, 47
        %s346 = scalar_select %p345, %s344, 47
        %s347 = smul.addr %s346, 8
        %s348 = scalar_lea.vmem %s3, %s347
        %s349 = smul.u32 16, %s24
      $region32: #{txgnn_forward.1} parent=19 // pred_fallthru
        _
      // Predicated region
      $region33: #{txgnn_forward.1} parent=19 // pred_check
        %p350 = pneg %p147
      $region34: #{txgnn_forward.1} parent=19 // pred_check_branch
        %352 = sbr.rel (%p350) target = $region36
      $region35: #{txgnn_forward.1} parent=19 // pred_region
        %p353 = scmp.lt.s32.totalorder %s23, 1
        %s354 = scalar_select %p353, %s23, 1
        %s355 = smul.addr %s354, 16
        %s356 = smul.addr %s355, 8
        %s357 = scalar_lea.vmem %s4, %s356
      $region36: #{txgnn_forward.1} parent=19 // pred_fallthru
        _
      // Predicated region
      $region37: #{txgnn_forward.1} parent=19 // pred_check
        %p358 = pneg %p173
      $region38: #{txgnn_forward.1} parent=19 // pred_check_branch
        %360 = sbr.rel (%p358) target = $region40
      $region39: #{txgnn_forward.1} parent=19 // pred_region
        %p361 = scmp.lt.s32.totalorder %s23, 1
        %s362 = scalar_select %p361, %s23, 1
        %s363 = smul.addr %s362, 16
        %s364 = smul.addr %s363, 8
        %s365 = scalar_lea.vmem %s5, %s364
      $region40: #{txgnn_forward.1} parent=19 // pred_fallthru
        _
      // Predicated region
      $region41: #{txgnn_forward.1} parent=19 // pred_check
        %p366 = pneg %p199
      $region42: #{txgnn_forward.1} parent=19 // pred_check_branch
        %368 = sbr.rel (%p366) target = $region44
      $region43: #{txgnn_forward.1} parent=19 // pred_region
        %p369 = scmp.lt.s32.totalorder %s23, 1
        %s370 = scalar_select %p369, %s23, 1
        %s371 = scalar_lea.vmem %s6, %s370
      $region44: #{txgnn_forward.1} parent=19 // pred_fallthru
        _
      // Predicated region
      $region45: #{txgnn_forward.1} parent=19 // pred_check
        %p372 = pneg %p225
      $region46: #{txgnn_forward.1} parent=19 // pred_check_branch
        %374 = sbr.rel (%p372) target = $region48
      $region47: #{txgnn_forward.1} parent=19 // pred_region
        %p375 = scmp.lt.s32.totalorder %s23, 1
        %s376 = scalar_select %p375, %s23, 1
        %s377 = smul.addr %s376, 16
        %s378 = smul.addr %s377, 8
        %s379 = scalar_lea.vmem %s7, %s378
      $region48: #{txgnn_forward.1} parent=19 // pred_fallthru
        _
      // Predicated region
      $region49: #{txgnn_forward.1} parent=19 // pred_check
        %p380 = pneg %p251
      $region50: #{txgnn_forward.1} parent=19 // pred_check_branch
        %382 = sbr.rel (%p380) target = $region52
      $region51: #{txgnn_forward.1} parent=19 // pred_region
        %p383 = scmp.lt.s32.totalorder %s23, 1
        %s384 = scalar_select %p383, %s23, 1
        %s385 = smul.addr %s384, 16
        %s386 = smul.addr %s385, 8
        %s387 = scalar_lea.vmem %s8, %s386
      $region52: #{txgnn_forward.1} parent=19 // pred_fallthru
        _
      // Predicated region
      $region53: #{txgnn_forward.1} parent=19 // pred_check
        %p388 = pneg %p277
      $region54: #{txgnn_forward.1} parent=19 // pred_check_branch
        %390 = sbr.rel (%p388) target = $region56
      $region55: #{txgnn_forward.1} parent=19 // pred_region
        %p391 = scmp.lt.s32.totalorder %s23, 1
        %s392 = scalar_select %p391, %s23, 1
        %s393 = scalar_lea.vmem %s9, %s392
      $region56: #{txgnn_forward.1} parent=19 // pred_fallthru
        _
    $region20: #{txgnn_forward.1} parent=5 // pred_fallthru
      _
    %p394 = scmp.le.s32.totalorder 1, %s16
    %p395 = scmp.lt.s32.totalorder %s16, 7
    %p396 = pnand %p394, %p395
    %p397 = pneg %p396
    // Predicated region
    $region57: #{txgnn_forward.1} parent=5 // pred_check
      _
    $region58: #{txgnn_forward.1} parent=5 // pred_check_branch
      %399 = sbr.rel (%p396) target = $region60
    $region59: #{txgnn_forward.1} parent=5 // pred_region
      %s400 = ssub.s32 %s16, 1
      %s401 = smul.u32 16, %s26
      %p402 = scmp.lt.s32.totalorder %s401, 47
      %s403 = scalar_select %p402, %s401, 47
      %s404 = smul.addr %s403, 8
      %s405 = scalar_lea.vmem %s0, %s404
      %p406 = pneg %p54
      %p407 = pneg %p51
      %p408 = scmp.lt.s32.totalorder %s26, 2
      %s409 = scalar_select %p408, %s26, 2
      %s410 = scalar_lea.vmem %s1, %s409
      %p411 = pneg %p80
      %p412 = pneg %p77
      %p413 = pneg %p101
      %p414 = pneg %p98
      %s415 = smul.u32 16, %s26
      %p416 = scmp.lt.s32.totalorder %s415, 47
      %s417 = scalar_select %p416, %s415, 47
      %s418 = smul.addr %s417, 8
      %s419 = scalar_lea.vmem %s3, %s418
      %p420 = pneg %p127
      %p421 = pneg %p124
      %p422 = scmp.lt.s32.totalorder %s25, 1
      %s423 = scalar_select %p422, %s25, 1
      %s424 = smul.addr %s423, 16
      %s425 = smul.addr %s424, 8
      %s426 = scalar_lea.vmem %s4, %s425
      %p427 = pneg %p153
      %p428 = pneg %p150
      %p429 = scmp.lt.s32.totalorder %s25, 1
      %s430 = scalar_select %p429, %s25, 1
      %s431 = smul.addr %s430, 16
      %s432 = smul.addr %s431, 8
      %s433 = scalar_lea.vmem %s5, %s432
      %p434 = pneg %p179
      %p435 = pneg %p176
      %p436 = scmp.lt.s32.totalorder %s25, 1
      %s437 = scalar_select %p436, %s25, 1
      %s438 = scalar_lea.vmem %s6, %s437
      %p439 = pneg %p205
      %p440 = pneg %p202
      %p441 = scmp.lt.s32.totalorder %s25, 1
      %s442 = scalar_select %p441, %s25, 1
      %s443 = smul.addr %s442, 16
      %s444 = smul.addr %s443, 8
      %s445 = scalar_lea.vmem %s7, %s444
      %p446 = pneg %p231
      %p447 = pneg %p228
      %p448 = scmp.lt.s32.totalorder %s25, 1
      %s449 = scalar_select %p448, %s25, 1
      %s450 = smul.addr %s449, 16
      %s451 = smul.addr %s450, 8
      %s452 = scalar_lea.vmem %s8, %s451
      %p453 = pneg %p257
      %p454 = pneg %p254
      %p455 = scmp.lt.s32.totalorder %s25, 1
      %s456 = scalar_select %p455, %s25, 1
      %s457 = scalar_lea.vmem %s9, %s456
      %p458 = pneg %p283
      %p459 = pneg %p280
      %p460 = pneg %p304
      %p461 = pneg %p301
      %s462 = smul.u32 16, %s26
      %p463 = scmp.lt.s32.totalorder %s462, 47
      %s464 = scalar_select %p463, %s462, 47
      %s465 = smul.addr %s464, 8
      %s466 = scalar_lea.vmem %s0, %s465
      %s467 = smul.u32 16, %s26
      %p468 = scmp.lt.s32.totalorder %s26, 2
      %s469 = scalar_select %p468, %s26, 2
      %s470 = scalar_lea.vmem %s1, %s469
      %s471 = smul.u32 16, %s26
      %p472 = scmp.lt.s32.totalorder %s471, 47
      %s473 = scalar_select %p472, %s471, 47
      %s474 = smul.addr %s473, 8
      %s475 = scalar_lea.vmem %s3, %s474
      %s476 = smul.u32 16, %s26
      %p477 = scmp.lt.s32.totalorder %s25, 1
      %s478 = scalar_select %p477, %s25, 1
      %s479 = smul.addr %s478, 16
      %s480 = smul.addr %s479, 8
      %s481 = scalar_lea.vmem %s4, %s480
      %p482 = scmp.lt.s32.totalorder %s25, 1
      %s483 = scalar_select %p482, %s25, 1
      %s484 = smul.addr %s483, 16
      %s485 = smul.addr %s484, 8
      %s486 = scalar_lea.vmem %s5, %s485
      %p487 = scmp.lt.s32.totalorder %s25, 1
      %s488 = scalar_select %p487, %s25, 1
      %s489 = scalar_lea.vmem %s6, %s488
      %p490 = scmp.lt.s32.totalorder %s25, 1
      %s491 = scalar_select %p490, %s25, 1
      %s492 = smul.addr %s491, 16
      %s493 = smul.addr %s492, 8
      %s494 = scalar_lea.vmem %s7, %s493
      %p495 = scmp.lt.s32.totalorder %s25, 1
      %s496 = scalar_select %p495, %s25, 1
      %s497 = smul.addr %s496, 16
      %s498 = smul.addr %s497, 8
      %s499 = scalar_lea.vmem %s8, %s498
      %p500 = scmp.lt.s32.totalorder %s25, 1
      %s501 = scalar_select %p500, %s25, 1
      %s502 = scalar_lea.vmem %s9, %s501
      %p503 = scmp.eq.s32.totalorder %s25, 0
      %p504 = scmp.eq.s32.totalorder %s26, 0
      %p505 = pnand %p503, %p504
      %p506 = pneg %p505
      // Predicated region
      $region61: #{txgnn_forward.1} parent=59 // pred_check
        _
      $region62: #{txgnn_forward.1} parent=59 // pred_check_branch
        %508 = sbr.rel (%p505) target = $region64
      $region63: #{txgnn_forward.1} parent=59 // pred_region
        %v509 = vld [vmem:[%s2] sm:$0xff]
        %v510 = vld [vmem:[%s2 + $0x8] sm:$0xff]
        %v511 = vld [vmem:[%s2 + $0x10] sm:$0xff]
        %v512 = vld [vmem:[%s2 + $0x18] sm:$0xff]
        %v513 = vld [vmem:[%s2 + $0x20] sm:$0xff]
        %514 = vst [vmem:[#allocation2] sm:$0xff] %v509
        %515 = vst [vmem:[#allocation2 + $0x8] sm:$0xff] %v510
        %516 = vst [vmem:[#allocation2 + $0x10] sm:$0xff] %v511
        %517 = vst [vmem:[#allocation2 + $0x18] sm:$0xff] %v512
        %518 = vst [vmem:[#allocation2 + $0x20] sm:$0xff] %v513
      $region64: #{txgnn_forward.1} parent=59 // pred_fallthru
        _
      // Predicated region
      $region65: #{txgnn_forward.1} parent=59 // pred_check
        %p519 = pneg %p504
      $region66: #{txgnn_forward.1} parent=59 // pred_check_branch
        %521 = sbr.rel (%p519) target = $region68
      $region67: #{txgnn_forward.1} parent=59 // pred_region
        %522 = vst [vmem:[#allocation3] sm:$0xff] 0.0
        %523 = vst [vmem:[#allocation3 + $0x8] sm:$0xff] 0.0
        %524 = vst [vmem:[#allocation3 + $0x10] sm:$0xff] 0.0
        %525 = vst [vmem:[#allocation3 + $0x18] sm:$0xff] 0.0
        %526 = vst [vmem:[#allocation3 + $0x20] sm:$0xff] 0.0
      $region68: #{txgnn_forward.1} parent=59 // pred_fallthru
        _
      %v527 = vld [vmem:[%s466] sm:$0xff]
      %v528 = vld [vmem:[%s466 + $0x8] sm:$0xff]
      %v529 = vld [vmem:[%s466 + $0x10] sm:$0xff]
      %v530 = vld [vmem:[%s466 + $0x18] sm:$0xff]
      %v531 = vld [vmem:[%s466 + $0x20] sm:$0xff]
      %v532 = vld [vmem:[%s466 + $0x28] sm:$0xff]
      %v533 = vld [vmem:[%s466 + $0x30] sm:$0xff]
      %v534 = vld [vmem:[%s466 + $0x38] sm:$0xff]
      %v535 = vld [vmem:[%s466 + $0x40] sm:$0xff]
      %v536 = vld [vmem:[%s466 + $0x48] sm:$0xff]
      %v537 = vld [vmem:[%s466 + $0x50] sm:$0xff]
      %v538 = vld [vmem:[%s466 + $0x58] sm:$0xff]
      %v539 = vld [vmem:[%s466 + $0x60] sm:$0xff]
      %v540 = vld [vmem:[%s466 + $0x68] sm:$0xff]
      %v541 = vld [vmem:[%s466 + $0x70] sm:$0xff]
      %v542 = vld [vmem:[%s466 + $0x78] sm:$0xff]
      %v543 = vld [vmem:[%s470] sm:$0x1]
      %v544 = vlaneseq
      %v545 = vand.u32 %v544, 127
      %546 = vset.pattern.permute.xlu0 0
      %547 = vperm.xlu0 %546, %v527
      %v548 = vpop.permute.xlu0 %547
      %549 = vset.pattern.permute.xlu0 0
      %550 = vperm.xlu0 %549, %v528
      %v551 = vpop.permute.xlu0 %550
      %552 = vset.pattern.permute.xlu0 0
      %553 = vperm.xlu0 %552, %v529
      %v554 = vpop.permute.xlu0 %553
      %555 = vset.pattern.permute.xlu0 0
      %556 = vperm.xlu0 %555, %v530
      %v557 = vpop.permute.xlu0 %556
      %558 = vset.pattern.permute.xlu0 0
      %559 = vperm.xlu0 %558, %v531
      %v560 = vpop.permute.xlu0 %559
      %561 = vset.pattern.permute.xlu0 0
      %562 = vperm.xlu0 %561, %v532
      %v563 = vpop.permute.xlu0 %562
      %564 = vset.pattern.permute.xlu0 0
      %565 = vperm.xlu0 %564, %v533
      %v566 = vpop.permute.xlu0 %565
      %567 = vset.pattern.permute.xlu0 0
      %568 = vperm.xlu0 %567, %v534
      %v569 = vpop.permute.xlu0 %568
      %570 = vset.pattern.permute.xlu0 0
      %571 = vperm.xlu0 %570, %v535
      %v572 = vpop.permute.xlu0 %571
      %573 = vset.pattern.permute.xlu0 0
      %574 = vperm.xlu0 %573, %v536
      %v575 = vpop.permute.xlu0 %574
      %576 = vset.pattern.permute.xlu0 0
      %577 = vperm.xlu0 %576, %v537
      %v578 = vpop.permute.xlu0 %577
      %579 = vset.pattern.permute.xlu0 0
      %580 = vperm.xlu0 %579, %v538
      %v581 = vpop.permute.xlu0 %580
      %582 = vset.pattern.permute.xlu0 0
      %583 = vperm.xlu0 %582, %v539
      %v584 = vpop.permute.xlu0 %583
      %585 = vset.pattern.permute.xlu0 0
      %586 = vperm.xlu0 %585, %v540
      %v587 = vpop.permute.xlu0 %586
      %588 = vset.pattern.permute.xlu0 0
      %589 = vperm.xlu0 %588, %v541
      %v590 = vpop.permute.xlu0 %589
      %591 = vset.pattern.permute.xlu0 0
      %592 = vperm.xlu0 %591, %v542
      %v593 = vpop.permute.xlu0 %592
      %vm594 = vcmp.eq.s32.totalorder %v545, %v548
      %vm595 = vcmp.eq.s32.totalorder %v545, %v551
      %vm596 = vcmp.eq.s32.totalorder %v545, %v554
      %vm597 = vcmp.eq.s32.totalorder %v545, %v557
      %vm598 = vcmp.eq.s32.totalorder %v545, %v560
      %vm599 = vcmp.eq.s32.totalorder %v545, %v563
      %vm600 = vcmp.eq.s32.totalorder %v545, %v566
      %vm601 = vcmp.eq.s32.totalorder %v545, %v569
      %vm602 = vcmp.eq.s32.totalorder %v545, %v572
      %vm603 = vcmp.eq.s32.totalorder %v545, %v575
      %vm604 = vcmp.eq.s32.totalorder %v545, %v578
      %vm605 = vcmp.eq.s32.totalorder %v545, %v581
      %vm606 = vcmp.eq.s32.totalorder %v545, %v584
      %vm607 = vcmp.eq.s32.totalorder %v545, %v587
      %vm608 = vcmp.eq.s32.totalorder %v545, %v590
      %vm609 = vcmp.eq.s32.totalorder %v545, %v593
      %v610 = vsel %vm594, 1, 0
      %v611 = vsel %vm595, 1, 0
      %v612 = vsel %vm596, 1, 0
      %v613 = vsel %vm597, 1, 0
      %v614 = vsel %vm598, 1, 0
      %v615 = vsel %vm599, 1, 0
      %v616 = vsel %vm600, 1, 0
      %v617 = vsel %vm601, 1, 0
      %v618 = vsel %vm602, 1, 0
      %v619 = vsel %vm603, 1, 0
      %v620 = vsel %vm604, 1, 0
      %v621 = vsel %vm605, 1, 0
      %v622 = vsel %vm606, 1, 0
      %v623 = vsel %vm607, 1, 0
      %v624 = vsel %vm608, 1, 0
      %v625 = vsel %vm609, 1, 0
      %v626 = vcvt.s32.f32 %v610
      %v627 = vcvt.s32.f32 %v611
      %v628 = vcvt.s32.f32 %v612
      %v629 = vcvt.s32.f32 %v613
      %v630 = vcvt.s32.f32 %v614
      %v631 = vcvt.s32.f32 %v615
      %v632 = vcvt.s32.f32 %v616
      %v633 = vcvt.s32.f32 %v617
      %v634 = vcvt.s32.f32 %v618
      %v635 = vcvt.s32.f32 %v619
      %v636 = vcvt.s32.f32 %v620
      %v637 = vcvt.s32.f32 %v621
      %v638 = vcvt.s32.f32 %v622
      %v639 = vcvt.s32.f32 %v623
      %v640 = vcvt.s32.f32 %v624
      %v641 = vcvt.s32.f32 %v625
      %v642 = vld [vmem:[#allocation2] sm:$0xff]
      %v643 = vld [vmem:[#allocation2 + $0x8] sm:$0xff]
      %v644 = vld [vmem:[#allocation2 + $0x10] sm:$0xff]
      %v645 = vld [vmem:[#allocation2 + $0x18] sm:$0xff]
      %v646 = vld [vmem:[#allocation2 + $0x20] sm:$0xff]
      %vm647 = vcmask 326656
      %v649 = vsel %vm647, %v626, 0
      %v652 = vsel %vm647, %v627, 0
      %v655 = vsel %vm647, %v628, 0
      %v658 = vsel %vm647, %v629, 0
      %v661 = vsel %vm647, %v630, 0
      %v664 = vsel %vm647, %v631, 0
      %v667 = vsel %vm647, %v632, 0
      %v670 = vsel %vm647, %v633, 0
      %v673 = vsel %vm647, %v634, 0
      %v676 = vsel %vm647, %v635, 0
      %v679 = vsel %vm647, %v636, 0
      %v682 = vsel %vm647, %v637, 0
      %v685 = vsel %vm647, %v638, 0
      %v688 = vsel %vm647, %v639, 0
      %v691 = vsel %vm647, %v640, 0
      %v694 = vsel %vm647, %v641, 0
      %696 = vmatpush.msra.mxu0 0.0
      %697 = vmatpush.msra.mxu0 0.0
      %698 = vmatpush.msra.mxu0 0.0
      %699 = vmatpush.msra.mxu0 0.0
      %700 = vmatpush.msra.mxu0 0.0
      %701 = vmatpush.msra.mxu0 0.0
      %702 = vmatpush.msra.mxu0 0.0
      %703 = vmatpush.msra.mxu0 0.0
      %704 = vmatpush.msra.mxu0 0.0
      %705 = vmatpush.msra.mxu0 0.0
      %706 = vmatpush.msra.mxu0 0.0
      %707 = vmatpush.msra.mxu0 %v646
      %708 = vmatpush.msra.mxu0 %v645
      %709 = vmatpush.msra.mxu0 %v644
      %710 = vmatpush.msra.mxu0 %v643
      %711 = vmatpush.msra.mxu0 %v642
      %712 = vmatmul.f32.gmra.mxu0 %v649
      %v713 = vpop.f32.mrf.mxu0
      %v714 = vadd.f32 0.0, %v713
      %715 = vmatmul.f32.gmra.mxu0 %v652
      %v716 = vpop.f32.mrf.mxu0
      %v717 = vadd.f32 0.0, %v716
      %718 = vmatmul.f32.gmra.mxu0 %v655
      %v719 = vpop.f32.mrf.mxu0
      %v720 = vadd.f32 0.0, %v719
      %721 = vmatmul.f32.gmra.mxu0 %v658
      %v722 = vpop.f32.mrf.mxu0
      %v723 = vadd.f32 0.0, %v722
      %724 = vmatmul.f32.gmra.mxu0 %v661
      %v725 = vpop.f32.mrf.mxu0
      %v726 = vadd.f32 0.0, %v725
      %727 = vmatmul.f32.gmra.mxu0 %v664
      %v728 = vpop.f32.mrf.mxu0
      %v729 = vadd.f32 0.0, %v728
      %730 = vmatmul.f32.gmra.mxu0 %v667
      %v731 = vpop.f32.mrf.mxu0
      %v732 = vadd.f32 0.0, %v731
      %733 = vmatmul.f32.gmra.mxu0 %v670
      %v734 = vpop.f32.mrf.mxu0
      %v735 = vadd.f32 0.0, %v734
      %736 = vmatmul.f32.gmra.mxu0 %v673
      %v737 = vpop.f32.mrf.mxu0
      %v738 = vadd.f32 0.0, %v737
      %739 = vmatmul.f32.gmra.mxu0 %v676
      %v740 = vpop.f32.mrf.mxu0
      %v741 = vadd.f32 0.0, %v740
      %742 = vmatmul.f32.gmra.mxu0 %v679
      %v743 = vpop.f32.mrf.mxu0
      %v744 = vadd.f32 0.0, %v743
      %745 = vmatmul.f32.gmra.mxu0 %v682
      %v746 = vpop.f32.mrf.mxu0
      %v747 = vadd.f32 0.0, %v746
      %748 = vmatmul.f32.gmra.mxu0 %v685
      %v749 = vpop.f32.mrf.mxu0
      %v750 = vadd.f32 0.0, %v749
      %751 = vmatmul.f32.gmra.mxu0 %v688
      %v752 = vpop.f32.mrf.mxu0
      %v753 = vadd.f32 0.0, %v752
      %754 = vmatmul.f32.gmra.mxu0 %v691
      %v755 = vpop.f32.mrf.mxu0
      %v756 = vadd.f32 0.0, %v755
      %757 = vmatmul.f32.gmra.mxu0 %v694
      %v758 = vpop.f32.mrf.mxu0
      %v759 = vadd.f32 0.0, %v758
      %760 = vdwg.mxu0
      %v761 = vld [vmem:[%s481] sm:$0xff]
      %v762 = vld [vmem:[%s481 + $0x8] sm:$0xff]
      %v763 = vld [vmem:[%s481 + $0x10] sm:$0xff]
      %v764 = vld [vmem:[%s481 + $0x18] sm:$0xff]
      %v765 = vld [vmem:[%s481 + $0x20] sm:$0xff]
      %v766 = vld [vmem:[%s481 + $0x28] sm:$0xff]
      %v767 = vld [vmem:[%s481 + $0x30] sm:$0xff]
      %v768 = vld [vmem:[%s481 + $0x38] sm:$0xff]
      %v769 = vld [vmem:[%s481 + $0x40] sm:$0xff]
      %v770 = vld [vmem:[%s481 + $0x48] sm:$0xff]
      %v771 = vld [vmem:[%s481 + $0x50] sm:$0xff]
      %v772 = vld [vmem:[%s481 + $0x58] sm:$0xff]
      %v773 = vld [vmem:[%s481 + $0x60] sm:$0xff]
      %v774 = vld [vmem:[%s481 + $0x68] sm:$0xff]
      %v775 = vld [vmem:[%s481 + $0x70] sm:$0xff]
      %v776 = vld [vmem:[%s481 + $0x78] sm:$0xff]
      %v777 = vld [vmem:[%s475] sm:$0xff]
      %v778 = vld [vmem:[%s475 + $0x8] sm:$0xff]
      %v779 = vld [vmem:[%s475 + $0x10] sm:$0xff]
      %v780 = vld [vmem:[%s475 + $0x18] sm:$0xff]
      %v781 = vld [vmem:[%s475 + $0x20] sm:$0xff]
      %v782 = vld [vmem:[%s475 + $0x28] sm:$0xff]
      %v783 = vld [vmem:[%s475 + $0x30] sm:$0xff]
      %v784 = vld [vmem:[%s475 + $0x38] sm:$0xff]
      %v785 = vld [vmem:[%s475 + $0x40] sm:$0xff]
      %v786 = vld [vmem:[%s475 + $0x48] sm:$0xff]
      %v787 = vld [vmem:[%s475 + $0x50] sm:$0xff]
      %v788 = vld [vmem:[%s475 + $0x58] sm:$0xff]
      %v789 = vld [vmem:[%s475 + $0x60] sm:$0xff]
      %v790 = vld [vmem:[%s475 + $0x68] sm:$0xff]
      %v791 = vld [vmem:[%s475 + $0x70] sm:$0xff]
      %v792 = vld [vmem:[%s475 + $0x78] sm:$0xff]
      %v793 = vld [vmem:[%s486] sm:$0xff]
      %v794 = vld [vmem:[%s486 + $0x8] sm:$0xff]
      %v795 = vld [vmem:[%s486 + $0x10] sm:$0xff]
      %v796 = vld [vmem:[%s486 + $0x18] sm:$0xff]
      %v797 = vld [vmem:[%s486 + $0x20] sm:$0xff]
      %v798 = vld [vmem:[%s486 + $0x28] sm:$0xff]
      %v799 = vld [vmem:[%s486 + $0x30] sm:$0xff]
      %v800 = vld [vmem:[%s486 + $0x38] sm:$0xff]
      %v801 = vld [vmem:[%s486 + $0x40] sm:$0xff]
      %v802 = vld [vmem:[%s486 + $0x48] sm:$0xff]
      %v803 = vld [vmem:[%s486 + $0x50] sm:$0xff]
      %v804 = vld [vmem:[%s486 + $0x58] sm:$0xff]
      %v805 = vld [vmem:[%s486 + $0x60] sm:$0xff]
      %v806 = vld [vmem:[%s486 + $0x68] sm:$0xff]
      %v807 = vld [vmem:[%s486 + $0x70] sm:$0xff]
      %v808 = vld [vmem:[%s486 + $0x78] sm:$0xff]
      %809 = vmatpush.msra.mxu0 %v808
      %810 = vmatpush.msra.mxu0 %v807
      %811 = vmatpush.msra.mxu0 %v806
      %812 = vmatpush.msra.mxu0 %v805
      %813 = vmatpush.msra.mxu0 %v804
      %814 = vmatpush.msra.mxu0 %v803
      %815 = vmatpush.msra.mxu0 %v802
      %816 = vmatpush.msra.mxu0 %v801
      %817 = vmatpush.msra.mxu0 %v800
      %818 = vmatpush.msra.mxu0 %v799
      %819 = vmatpush.msra.mxu0 %v798
      %820 = vmatpush.msra.mxu0 %v797
      %821 = vmatpush.msra.mxu0 %v796
      %822 = vmatpush.msra.mxu0 %v795
      %823 = vmatpush.msra.mxu0 %v794
      %824 = vmatpush.msra.mxu0 %v793
      %825 = vmatmul.f32.gmra.mxu0 %v777
      %v826 = vpop.f32.mrf.mxu0
      %v827 = vadd.f32 0.0, %v826
      %828 = vmatmul.f32.gmra.mxu0 %v778
      %v829 = vpop.f32.mrf.mxu0
      %v830 = vadd.f32 0.0, %v829
      %831 = vmatmul.f32.gmra.mxu0 %v779
      %v832 = vpop.f32.mrf.mxu0
      %v833 = vadd.f32 0.0, %v832
      %834 = vmatmul.f32.gmra.mxu0 %v780
      %v835 = vpop.f32.mrf.mxu0
      %v836 = vadd.f32 0.0, %v835
      %837 = vmatmul.f32.gmra.mxu0 %v781
      %v838 = vpop.f32.mrf.mxu0
      %v839 = vadd.f32 0.0, %v838
      %840 = vmatmul.f32.gmra.mxu0 %v782
      %v841 = vpop.f32.mrf.mxu0
      %v842 = vadd.f32 0.0, %v841
      %843 = vmatmul.f32.gmra.mxu0 %v783
      %v844 = vpop.f32.mrf.mxu0
      %v845 = vadd.f32 0.0, %v844
      %846 = vmatmul.f32.gmra.mxu0 %v784
      %v847 = vpop.f32.mrf.mxu0
      %v848 = vadd.f32 0.0, %v847
      %849 = vmatmul.f32.gmra.mxu0 %v785
      %v850 = vpop.f32.mrf.mxu0
      %v851 = vadd.f32 0.0, %v850
      %852 = vmatmul.f32.gmra.mxu0 %v786
      %v853 = vpop.f32.mrf.mxu0
      %v854 = vadd.f32 0.0, %v853
      %855 = vmatmul.f32.gmra.mxu0 %v787
      %v856 = vpop.f32.mrf.mxu0
      %v857 = vadd.f32 0.0, %v856
      %858 = vmatmul.f32.gmra.mxu0 %v788
      %v859 = vpop.f32.mrf.mxu0
      %v860 = vadd.f32 0.0, %v859
      %861 = vmatmul.f32.gmra.mxu0 %v789
      %v862 = vpop.f32.mrf.mxu0
      %v863 = vadd.f32 0.0, %v862
      %864 = vmatmul.f32.gmra.mxu0 %v790
      %v865 = vpop.f32.mrf.mxu0
      %v866 = vadd.f32 0.0, %v865
      %867 = vmatmul.f32.gmra.mxu0 %v791
      %v868 = vpop.f32.mrf.mxu0
      %v869 = vadd.f32 0.0, %v868
      %870 = vmatmul.f32.gmra.mxu0 %v792
      %v871 = vpop.f32.mrf.mxu0
      %v872 = vadd.f32 0.0, %v871
      %873 = vdwg.mxu0
      %874 = vmatpush.msra.mxu0 %v776
      %875 = vmatpush.msra.mxu0 %v775
      %876 = vmatpush.msra.mxu0 %v774
      %877 = vmatpush.msra.mxu0 %v773
      %878 = vmatpush.msra.mxu0 %v772
      %879 = vmatpush.msra.mxu0 %v771
      %880 = vmatpush.msra.mxu0 %v770
      %881 = vmatpush.msra.mxu0 %v769
      %882 = vmatpush.msra.mxu0 %v768
      %883 = vmatpush.msra.mxu0 %v767
      %884 = vmatpush.msra.mxu0 %v766
      %885 = vmatpush.msra.mxu0 %v765
      %886 = vmatpush.msra.mxu0 %v764
      %887 = vmatpush.msra.mxu0 %v763
      %888 = vmatpush.msra.mxu0 %v762
      %889 = vmatpush.msra.mxu0 %v761
      %890 = vmatmul.f32.gmra.mxu0 %v714
      %v891 = vpop.f32.mrf.mxu0
      %v892 = vadd.f32 %v827, %v891
      %893 = vmatmul.f32.gmra.mxu0 %v717
      %v894 = vpop.f32.mrf.mxu0
      %v895 = vadd.f32 %v830, %v894
      %896 = vmatmul.f32.gmra.mxu0 %v720
      %v897 = vpop.f32.mrf.mxu0
      %v898 = vadd.f32 %v833, %v897
      %899 = vmatmul.f32.gmra.mxu0 %v723
      %v900 = vpop.f32.mrf.mxu0
      %v901 = vadd.f32 %v836, %v900
      %902 = vmatmul.f32.gmra.mxu0 %v726
      %v903 = vpop.f32.mrf.mxu0
      %v904 = vadd.f32 %v839, %v903
      %905 = vmatmul.f32.gmra.mxu0 %v729
      %v906 = vpop.f32.mrf.mxu0
      %v907 = vadd.f32 %v842, %v906
      %908 = vmatmul.f32.gmra.mxu0 %v732
      %v909 = vpop.f32.mrf.mxu0
      %v910 = vadd.f32 %v845, %v909
      %911 = vmatmul.f32.gmra.mxu0 %v735
      %v912 = vpop.f32.mrf.mxu0
      %v913 = vadd.f32 %v848, %v912
      %914 = vmatmul.f32.gmra.mxu0 %v738
      %v915 = vpop.f32.mrf.mxu0
      %v916 = vadd.f32 %v851, %v915
      %917 = vmatmul.f32.gmra.mxu0 %v741
      %v918 = vpop.f32.mrf.mxu0
      %v919 = vadd.f32 %v854, %v918
      %920 = vmatmul.f32.gmra.mxu0 %v744
      %v921 = vpop.f32.mrf.mxu0
      %v922 = vadd.f32 %v857, %v921
      %923 = vmatmul.f32.gmra.mxu0 %v747
      %v924 = vpop.f32.mrf.mxu0
      %v925 = vadd.f32 %v860, %v924
      %926 = vmatmul.f32.gmra.mxu0 %v750
      %v927 = vpop.f32.mrf.mxu0
      %v928 = vadd.f32 %v863, %v927
      %929 = vmatmul.f32.gmra.mxu0 %v753
      %v930 = vpop.f32.mrf.mxu0
      %v931 = vadd.f32 %v866, %v930
      %932 = vmatmul.f32.gmra.mxu0 %v756
      %v933 = vpop.f32.mrf.mxu0
      %v934 = vadd.f32 %v869, %v933
      %935 = vmatmul.f32.gmra.mxu0 %v759
      %v936 = vpop.f32.mrf.mxu0
      %v937 = vadd.f32 %v872, %v936
      %938 = vdwg.mxu0
      %v939 = vld [vmem:[%s489] sm:$0x1]
      %v941 = vperm.slane %v939, 0
      %v943 = vadd.f32 %v892, %v941
      %v944 = vadd.f32 %v895, %v941
      %v945 = vadd.f32 %v898, %v941
      %v946 = vadd.f32 %v901, %v941
      %v947 = vadd.f32 %v904, %v941
      %v948 = vadd.f32 %v907, %v941
      %v949 = vadd.f32 %v910, %v941
      %v950 = vadd.f32 %v913, %v941
      %v951 = vadd.f32 %v916, %v941
      %v952 = vadd.f32 %v919, %v941
      %v953 = vadd.f32 %v922, %v941
      %v954 = vadd.f32 %v925, %v941
      %v955 = vadd.f32 %v928, %v941
      %v956 = vadd.f32 %v931, %v941
      %v957 = vadd.f32 %v934, %v941
      %v958 = vadd.f32 %v937, %v941
      %v959 = vmax.f32 %v943, 0.0
      %v960 = vmax.f32 %v944, 0.0
      %v961 = vmax.f32 %v945, 0.0
      %v962 = vmax.f32 %v946, 0.0
      %v963 = vmax.f32 %v947, 0.0
      %v964 = vmax.f32 %v948, 0.0
      %v965 = vmax.f32 %v949, 0.0
      %v966 = vmax.f32 %v950, 0.0
      %v967 = vmax.f32 %v951, 0.0
      %v968 = vmax.f32 %v952, 0.0
      %v969 = vmax.f32 %v953, 0.0
      %v970 = vmax.f32 %v954, 0.0
      %v971 = vmax.f32 %v955, 0.0
      %v972 = vmax.f32 %v956, 0.0
      %v973 = vmax.f32 %v957, 0.0
      %v974 = vmax.f32 %v958, 0.0
      %v975 = vlaneseq
      %v976 = vshrl.u32 %v975, 7
      %v977 = vadd.s32 %v976, 8
      %v978 = vadd.s32 %v976, 16
      %v979 = vadd.s32 %v976, 24
      %v980 = vadd.s32 %v976, 32
      %v981 = vperm.slane %v543, 0
      %vm982 = vcmp.eq.s32.totalorder %v976, %v981
      %vm983 = vcmp.eq.s32.totalorder %v977, %v981
      %vm984 = vcmp.eq.s32.totalorder %v978, %v981
      %vm985 = vcmp.eq.s32.totalorder %v979, %v981
      %vm986 = vcmp.eq.s32.totalorder %v980, %v981
      %v987 = vsel %vm982, 1, 0
      %v988 = vsel %vm983, 1, 0
      %v989 = vsel %vm984, 1, 0
      %v990 = vsel %vm985, 1, 0
      %v991 = vsel %vm986, 1, 0
      %v992 = vcvt.s32.f32 %v987
      %v993 = vcvt.s32.f32 %v988
      %v994 = vcvt.s32.f32 %v989
      %v995 = vcvt.s32.f32 %v990
      %v996 = vcvt.s32.f32 %v991
      %v997 = vld [vmem:[#allocation3] sm:$0xff]
      %v998 = vld [vmem:[#allocation3 + $0x8] sm:$0xff]
      %v999 = vld [vmem:[#allocation3 + $0x10] sm:$0xff]
      %v1000 = vld [vmem:[#allocation3 + $0x18] sm:$0xff]
      %v1001 = vld [vmem:[#allocation3 + $0x20] sm:$0xff]
      %1002 = vmatpush.msra.mxu0 %v974
      %1003 = vmatpush.msra.mxu0 %v973
      %1004 = vmatpush.msra.mxu0 %v972
      %1005 = vmatpush.msra.mxu0 %v971
      %1006 = vmatpush.msra.mxu0 %v970
      %1007 = vmatpush.msra.mxu0 %v969
      %1008 = vmatpush.msra.mxu0 %v968
      %1009 = vmatpush.msra.mxu0 %v967
      %1010 = vmatpush.msra.mxu0 %v966
      %1011 = vmatpush.msra.mxu0 %v965
      %1012 = vmatpush.msra.mxu0 %v964
      %1013 = vmatpush.msra.mxu0 %v963
      %1014 = vmatpush.msra.mxu0 %v962
      %1015 = vmatpush.msra.mxu0 %v961
      %1016 = vmatpush.msra.mxu0 %v960
      %1017 = vmatpush.msra.mxu0 %v959
      %1018 = vmatmul.f32.gmra.mxu0 %v992
      %v1019 = vpop.f32.mrf.mxu0
      %v1020 = vadd.f32 0.0, %v1019
      %1021 = vmatmul.f32.gmra.mxu0 %v993
      %v1022 = vpop.f32.mrf.mxu0
      %v1023 = vadd.f32 0.0, %v1022
      %1024 = vmatmul.f32.gmra.mxu0 %v994
      %v1025 = vpop.f32.mrf.mxu0
      %v1026 = vadd.f32 0.0, %v1025
      %1027 = vmatmul.f32.gmra.mxu0 %v995
      %v1028 = vpop.f32.mrf.mxu0
      %v1029 = vadd.f32 0.0, %v1028
      %1030 = vmatmul.f32.gmra.mxu0 %v996
      %v1031 = vpop.f32.mrf.mxu0
      %v1032 = vadd.f32 0.0, %v1031
      %1033 = vdwg.mxu0
      %v1034 = vadd.f32 %v997, %v1020
      %v1035 = vadd.f32 %v998, %v1023
      %v1036 = vadd.f32 %v999, %v1026
      %v1037 = vadd.f32 %v1000, %v1029
      %v1038 = vadd.f32 %v1001, %v1032
      %1039 = vst [vmem:[#allocation3] sm:$0xff] %v1034
      %1040 = vst [vmem:[#allocation3 + $0x8] sm:$0xff] %v1035
      %1041 = vst [vmem:[#allocation3 + $0x10] sm:$0xff] %v1036
      %1042 = vst [vmem:[#allocation3 + $0x18] sm:$0xff] %v1037
      %1043 = vst [vmem:[#allocation3 + $0x20] sm:$0xff] %v1038
      %p1044 = scmp.eq.s32.totalorder %s26, 2
      // Predicated region
      $region69: #{txgnn_forward.1} parent=59 // pred_check
        %p1045 = pneg %p1044
      $region70: #{txgnn_forward.1} parent=59 // pred_check_branch
        %1047 = sbr.rel (%p1045) target = $region72
      $region71: #{txgnn_forward.1} parent=59 // pred_region
        %v1048 = vld [vmem:[#allocation3] sm:$0xff]
        %v1049 = vld [vmem:[#allocation3 + $0x8] sm:$0xff]
        %v1050 = vld [vmem:[#allocation3 + $0x10] sm:$0xff]
        %v1051 = vld [vmem:[#allocation3 + $0x18] sm:$0xff]
        %v1052 = vld [vmem:[#allocation3 + $0x20] sm:$0xff]
        %v1053 = vld [vmem:[%s494] sm:$0xff]
        %v1054 = vld [vmem:[%s494 + $0x8] sm:$0xff]
        %v1055 = vld [vmem:[%s494 + $0x10] sm:$0xff]
        %v1056 = vld [vmem:[%s494 + $0x18] sm:$0xff]
        %v1057 = vld [vmem:[%s494 + $0x20] sm:$0xff]
        %v1058 = vld [vmem:[%s494 + $0x28] sm:$0xff]
        %v1059 = vld [vmem:[%s494 + $0x30] sm:$0xff]
        %v1060 = vld [vmem:[%s494 + $0x38] sm:$0xff]
        %v1061 = vld [vmem:[%s494 + $0x40] sm:$0xff]
        %v1062 = vld [vmem:[%s494 + $0x48] sm:$0xff]
        %v1063 = vld [vmem:[%s494 + $0x50] sm:$0xff]
        %v1064 = vld [vmem:[%s494 + $0x58] sm:$0xff]
        %v1065 = vld [vmem:[%s494 + $0x60] sm:$0xff]
        %v1066 = vld [vmem:[%s494 + $0x68] sm:$0xff]
        %v1067 = vld [vmem:[%s494 + $0x70] sm:$0xff]
        %v1068 = vld [vmem:[%s494 + $0x78] sm:$0xff]
        %v1069 = vld [vmem:[#allocation2] sm:$0xff]
        %v1070 = vld [vmem:[#allocation2 + $0x8] sm:$0xff]
        %v1071 = vld [vmem:[#allocation2 + $0x10] sm:$0xff]
        %v1072 = vld [vmem:[#allocation2 + $0x18] sm:$0xff]
        %v1073 = vld [vmem:[#allocation2 + $0x20] sm:$0xff]
        %v1074 = vld [vmem:[%s499] sm:$0xff]
        %v1075 = vld [vmem:[%s499 + $0x8] sm:$0xff]
        %v1076 = vld [vmem:[%s499 + $0x10] sm:$0xff]
        %v1077 = vld [vmem:[%s499 + $0x18] sm:$0xff]
        %v1078 = vld [vmem:[%s499 + $0x20] sm:$0xff]
        %v1079 = vld [vmem:[%s499 + $0x28] sm:$0xff]
        %v1080 = vld [vmem:[%s499 + $0x30] sm:$0xff]
        %v1081 = vld [vmem:[%s499 + $0x38] sm:$0xff]
        %v1082 = vld [vmem:[%s499 + $0x40] sm:$0xff]
        %v1083 = vld [vmem:[%s499 + $0x48] sm:$0xff]
        %v1084 = vld [vmem:[%s499 + $0x50] sm:$0xff]
        %v1085 = vld [vmem:[%s499 + $0x58] sm:$0xff]
        %v1086 = vld [vmem:[%s499 + $0x60] sm:$0xff]
        %v1087 = vld [vmem:[%s499 + $0x68] sm:$0xff]
        %v1088 = vld [vmem:[%s499 + $0x70] sm:$0xff]
        %v1089 = vld [vmem:[%s499 + $0x78] sm:$0xff]
        %1090 = vmatpush.msra.mxu0 %v1089
        %1091 = vmatpush.msra.mxu0 %v1088
        %1092 = vmatpush.msra.mxu0 %v1087
        %1093 = vmatpush.msra.mxu0 %v1086
        %1094 = vmatpush.msra.mxu0 %v1085
        %1095 = vmatpush.msra.mxu0 %v1084
        %1096 = vmatpush.msra.mxu0 %v1083
        %1097 = vmatpush.msra.mxu0 %v1082
        %1098 = vmatpush.msra.mxu0 %v1081
        %1099 = vmatpush.msra.mxu0 %v1080
        %1100 = vmatpush.msra.mxu0 %v1079
        %1101 = vmatpush.msra.mxu0 %v1078
        %1102 = vmatpush.msra.mxu0 %v1077
        %1103 = vmatpush.msra.mxu0 %v1076
        %1104 = vmatpush.msra.mxu0 %v1075
        %1105 = vmatpush.msra.mxu0 %v1074
        %1106 = vmatmul.f32.gmra.mxu0 %v1069
        %v1107 = vpop.f32.mrf.mxu0
        %v1108 = vadd.f32 0.0, %v1107
        %1109 = vmatmul.f32.gmra.mxu0 %v1070
        %v1110 = vpop.f32.mrf.mxu0
        %v1111 = vadd.f32 0.0, %v1110
        %1112 = vmatmul.f32.gmra.mxu0 %v1071
        %v1113 = vpop.f32.mrf.mxu0
        %v1114 = vadd.f32 0.0, %v1113
        %1115 = vmatmul.f32.gmra.mxu0 %v1072
        %v1116 = vpop.f32.mrf.mxu0
        %v1117 = vadd.f32 0.0, %v1116
        %1118 = vmatmul.f32.gmra.mxu0 %v1073
        %v1119 = vpop.f32.mrf.mxu0
        %v1120 = vadd.f32 0.0, %v1119
        %1121 = vdwg.mxu0
        %1122 = vmatpush.msra.mxu0 %v1068
        %1123 = vmatpush.msra.mxu0 %v1067
        %1124 = vmatpush.msra.mxu0 %v1066
        %1125 = vmatpush.msra.mxu0 %v1065
        %1126 = vmatpush.msra.mxu0 %v1064
        %1127 = vmatpush.msra.mxu0 %v1063
        %1128 = vmatpush.msra.mxu0 %v1062
        %1129 = vmatpush.msra.mxu0 %v1061
        %1130 = vmatpush.msra.mxu0 %v1060
        %1131 = vmatpush.msra.mxu0 %v1059
        %1132 = vmatpush.msra.mxu0 %v1058
        %1133 = vmatpush.msra.mxu0 %v1057
        %1134 = vmatpush.msra.mxu0 %v1056
        %1135 = vmatpush.msra.mxu0 %v1055
        %1136 = vmatpush.msra.mxu0 %v1054
        %1137 = vmatpush.msra.mxu0 %v1053
        %1138 = vmatmul.f32.gmra.mxu0 %v1048
        %v1139 = vpop.f32.mrf.mxu0
        %v1140 = vadd.f32 %v1108, %v1139
        %1141 = vmatmul.f32.gmra.mxu0 %v1049
        %v1142 = vpop.f32.mrf.mxu0
        %v1143 = vadd.f32 %v1111, %v1142
        %1144 = vmatmul.f32.gmra.mxu0 %v1050
        %v1145 = vpop.f32.mrf.mxu0
        %v1146 = vadd.f32 %v1114, %v1145
        %1147 = vmatmul.f32.gmra.mxu0 %v1051
        %v1148 = vpop.f32.mrf.mxu0
        %v1149 = vadd.f32 %v1117, %v1148
        %1150 = vmatmul.f32.gmra.mxu0 %v1052
        %v1151 = vpop.f32.mrf.mxu0
        %v1152 = vadd.f32 %v1120, %v1151
        %1153 = vdwg.mxu0
        %v1154 = vld [vmem:[%s502] sm:$0x1]
        %v1156 = vperm.slane %v1154, 0
        %v1158 = vadd.f32 %v1140, %v1156
        %v1159 = vadd.f32 %v1143, %v1156
        %v1160 = vadd.f32 %v1146, %v1156
        %v1161 = vadd.f32 %v1149, %v1156
        %v1162 = vadd.f32 %v1152, %v1156
        %v1163 = vmax.f32 %v1158, 0.0
        %v1164 = vmax.f32 %v1159, 0.0
        %v1165 = vmax.f32 %v1160, 0.0
        %v1166 = vmax.f32 %v1161, 0.0
        %v1167 = vmax.f32 %v1162, 0.0
        %1168 = vst [vmem:[#allocation2] sm:$0xff] %v1163
        %1169 = vst [vmem:[#allocation2 + $0x8] sm:$0xff] %v1164
        %1170 = vst [vmem:[#allocation2 + $0x10] sm:$0xff] %v1165
        %1171 = vst [vmem:[#allocation2 + $0x18] sm:$0xff] %v1166
        %1172 = vst [vmem:[#allocation2 + $0x20] sm:$0xff] %v1167
        %1173 = vst [vmem:[%s10] sm:$0xff] %v1163
        %1174 = vst [vmem:[%s10 + $0x8] sm:$0xff] %v1164
        %1175 = vst [vmem:[%s10 + $0x10] sm:$0xff] %v1165
        %1176 = vst [vmem:[%s10 + $0x18] sm:$0xff] %v1166
        %1177 = vst [vmem:[%s10 + $0x20] sm:$0xff] %v1167
      $region72: #{txgnn_forward.1} parent=59 // pred_fallthru
        _
      // Predicated region
      $region73: #{txgnn_forward.1} parent=59 // pred_check
        %p1178 = pneg %p301
      $region74: #{txgnn_forward.1} parent=59 // pred_check_branch
        %1180 = sbr.rel (%p1178) target = $region76
      $region75: #{txgnn_forward.1} parent=59 // pred_region
        _
      $region76: #{txgnn_forward.1} parent=59 // pred_fallthru
        _
      // Predicated region
      $region77: #{txgnn_forward.1} parent=59 // pred_check
        %p1181 = pneg %p301
      $region78: #{txgnn_forward.1} parent=59 // pred_check_branch
        %1183 = sbr.rel (%p1181) target = $region80
      $region79: #{txgnn_forward.1} parent=59 // pred_region
        _
      $region80: #{txgnn_forward.1} parent=59 // pred_fallthru
        _
    $region60: #{txgnn_forward.1} parent=5 // pred_fallthru
      _
    %p1184 = scmp.le.s32.totalorder 2, %s16
    // Predicated region
    $region81: #{txgnn_forward.1} parent=5 // pred_check
      %p1185 = pneg %p1184
    $region82: #{txgnn_forward.1} parent=5 // pred_check_branch
      %1187 = sbr.rel (%p1185) target = $region84
    $region83: #{txgnn_forward.1} parent=5 // pred_region
      %s1188 = ssub.s32 %s16, 2
    $region84: #{txgnn_forward.1} parent=5 // pred_fallthru
      _
  $region6: #{txgnn_forward.1} parent=0 // loop_footer
    %s20 = sadd.s32 1, %s16
  $region7: #{txgnn_forward.1} parent=0 // loop_footer_branch
    %15 = sbr.rel target = $region3
  $region8: #{txgnn_forward.1} parent=0 // loop_exit
    _

</llo_original>
